<compile_context>
chip_gen: v7x
topology: tpu7x:2x2x1
jax: 0.10.0
libtpu: 0.0.40
codegen_flags: <defaults>
</compile_context>

<pallas_src>
import functools

import jax
import jax.numpy as jnp
from jax.experimental import pallas as pl
from jax.experimental.pallas import tpu as pltpu

LANE = 128


def _round_up(x, m):
    return ((x + m - 1) // m) * m


def _pad2(x, rows, cols):
    r, c = x.shape
    return jnp.pad(x, ((0, rows - r), (0, cols - c)))


def _vmem_limit_bytes():
    """Generation-aware scoped-VMEM budget (~3/4 of capacity, capped at 96 MiB)."""
    cap = 64 * 1024 * 1024          # conservative fallback (v7x per-core VMEM)
    try:
        cap = int(pltpu.get_tpu_info().vmem_capacity_bytes)
    except Exception:
        pass
    return max(32 * 1024 * 1024, min(cap * 3 // 4, 96 * 1024 * 1024))


# ----------------------------------------------------------------------------
# Pallas kernels
# ----------------------------------------------------------------------------
def fused_gnn_kernel(nvalid_ref, a_ref, x_ref, w_ref, eps_ref, p_ref,
                     w1_ref, b1_ref, w2_ref, b2_ref, w3_ref, b3_ref, o_ref):
    """Whole forward pass, everything VMEM-resident (single grid step).

    Per conv layer l: h = ReLU(A_hat @ (h @ W_l) + bias_l) * bn_scale_l + bn_shift_l,
    padded node rows masked to zero.  Then g = P @ h (global mean pool) followed by
    the 3-layer post-MP Linear chain.  All matmuls accumulate in f32.
    """
    n_pad, f = x_ref.shape
    row_ok = (jax.lax.broadcasted_iota(jnp.int32, (n_pad, f), 0)
              < nvalid_ref[0]).astype(jnp.float32)

    a = a_ref[...]
    h = x_ref[...]
    for layer in range(w_ref.shape[0]):
        xw = jnp.dot(h, w_ref[layer], preferred_element_type=jnp.float32)
        agg = jnp.dot(a, xw.astype(jnp.bfloat16),
                      preferred_element_type=jnp.float32)
        e = eps_ref[layer]                                   # (8, f): bias/scale/shift
        hv = jnp.maximum(agg + e[0:1], 0.0) * e[1:2] + e[2:3]
        h = (hv * row_ok).astype(jnp.bfloat16)               # zero out padded rows
        # dropout is a no-op in eval mode

    g = jnp.dot(p_ref[...], h, preferred_element_type=jnp.float32)          # pooled
    g = jnp.dot(g.astype(jnp.bfloat16), w1_ref[...],
                preferred_element_type=jnp.float32) + b1_ref[...]
    g = jnp.dot(g.astype(jnp.bfloat16), w2_ref[...],
                preferred_element_type=jnp.float32) + b2_ref[...]
    o_ref[...] = jnp.dot(g.astype(jnp.bfloat16), w3_ref[...],
                         preferred_element_type=jnp.float32) + b3_ref[...]


def gcn_layer_kernel(nvalid_ref, a_ref, x_ref, w_ref, eps_ref, o_ref, acc_ref):
    """Tiled A_hat @ (X @ W) with f32 accumulator; X and W are VMEM-resident, the
    XW k-tile is recomputed per step (cheaper than streaming XW from HBM)."""
    i = pl.program_id(0)
    k = pl.program_id(1)
    tm, tk = a_ref.shape

    @pl.when(k == 0)
    def _():
        acc_ref[...] = jnp.zeros_like(acc_ref)

    xk = x_ref[pl.ds(pl.multiple_of(k * tk, tk), tk), :]
    xw = jnp.dot(xk, w_ref[...], preferred_element_type=jnp.float32)
    acc_ref[...] += jnp.dot(a_ref[...], xw.astype(jnp.bfloat16),
                            preferred_element_type=jnp.float32)

    @pl.when(k == pl.num_programs(1) - 1)
    def _():
        e = eps_ref[...]                                     # (8, f): bias/scale/shift
        rows = jax.lax.broadcasted_iota(jnp.int32, acc_ref.shape, 0) + i * tm
        row_ok = (rows < nvalid_ref[0]).astype(jnp.float32)
        h = jnp.maximum(acc_ref[...] + e[0:1], 0.0)
        o_ref[...] = ((h * e[1:2] + e[2:3]) * row_ok).astype(o_ref.dtype)


def pool_mlp_kernel(p_ref, h_ref, w1_ref, b1_ref, w2_ref, b2_ref, w3_ref, b3_ref,
                    o_ref, acc_ref):
    """global_mean_pool (P @ H, tiled over nodes) fused with the post-MP Linears."""
    k = pl.program_id(0)

    @pl.when(k == 0)
    def _():
        acc_ref[...] = jnp.zeros_like(acc_ref)

    acc_ref[...] += jnp.dot(p_ref[...], h_ref[...],
                            preferred_element_type=jnp.float32)

    @pl.when(k == pl.num_programs(0) - 1)
    def _():
        g = acc_ref[...].astype(jnp.bfloat16)
        g = jnp.dot(g, w1_ref[...], preferred_element_type=jnp.float32) + b1_ref[...]
        g = jnp.dot(g.astype(jnp.bfloat16), w2_ref[...],
                    preferred_element_type=jnp.float32) + b2_ref[...]
        o_ref[...] = jnp.dot(g.astype(jnp.bfloat16), w3_ref[...],
                             preferred_element_type=jnp.float32) + b3_ref[...]


# ----------------------------------------------------------------------------
# Pallas wrappers
# ----------------------------------------------------------------------------
def _full_spec(shape):
    ndim = len(shape)
    return pl.BlockSpec(shape, lambda i, nv, _n=ndim: (0,) * _n)


def gnn_forward_fused(a_hat, x, conv_w, conv_eps, p, mlp, nvalid, vmem_limit):
    (w1, b1), (w2, b2), (w3, b3) = mlp
    b_pad = p.shape[0]
    d3 = w3.shape[1]
    return pl.pallas_call(
        fused_gnn_kernel,
        out_shape=jax.ShapeDtypeStruct((b_pad, d3), jnp.float32),
        grid_spec=pltpu.PrefetchScalarGridSpec(
            num_scalar_prefetch=1,
            grid=(1,),
            in_specs=[_full_spec(a_hat.shape), _full_spec(x.shape),
                      _full_spec(conv_w.shape), _full_spec(conv_eps.shape),
                      _full_spec(p.shape),
                      _full_spec(w1.shape), _full_spec(b1.shape),
                      _full_spec(w2.shape), _full_spec(b2.shape),
                      _full_spec(w3.shape), _full_spec(b3.shape)],
            out_specs=_full_spec((b_pad, d3))),
        compiler_params=pltpu.CompilerParams(
            dimension_semantics=("arbitrary",),
            vmem_limit_bytes=vmem_limit),
    )(nvalid, a_hat, x, conv_w, conv_eps, p, w1, b1, w2, b2, w3, b3)


def gcn_layer_tiled(a_hat, h, w, eps, nvalid, *, tm, tk, vmem_limit):
    n_pad = a_hat.shape[0]
    f_in = h.shape[1]
    f_out = w.shape[1]
    return pl.pallas_call(
        gcn_layer_kernel,
        out_shape=jax.ShapeDtypeStruct((n_pad, f_out), jnp.bfloat16),
        grid_spec=pltpu.PrefetchScalarGridSpec(
            num_scalar_prefetch=1,
            grid=(n_pad // tm, n_pad // tk),
            in_specs=[pl.BlockSpec((tm, tk), lambda i, k, nv: (i, k)),       # A_hat
                      pl.BlockSpec((n_pad, f_in), lambda i, k, nv: (0, 0)),  # X (res.)
                      pl.BlockSpec((f_in, f_out), lambda i, k, nv: (0, 0)),  # W (res.)
                      pl.BlockSpec((8, f_out), lambda i, k, nv: (0, 0))],    # epilogue
            out_specs=pl.BlockSpec((tm, f_out), lambda i, k, nv: (i, 0)),
            scratch_shapes=[pltpu.VMEM((tm, f_out), jnp.float32)]),
        compiler_params=pltpu.CompilerParams(
            dimension_semantics=("parallel", "arbitrary"),
            vmem_limit_bytes=vmem_limit),
    )(nvalid, a_hat, h, w, eps)


def pool_mlp_tiled(p, h, mlp, *, tk, vmem_limit):
    (w1, b1), (w2, b2), (w3, b3) = mlp
    b_pad, n_pad = p.shape
    f_hid = h.shape[1]
    d3 = w3.shape[1]
    # TODO(synk): on v7x, add a 2-wide "parallel" leading axis to split the node
    # reduction across both TensorCores if this kernel ever becomes significant.
    return pl.pallas_call(
        pool_mlp_kernel,
        out_shape=jax.ShapeDtypeStruct((b_pad, d3), jnp.float32),
        grid_spec=pltpu.PrefetchScalarGridSpec(
            num_scalar_prefetch=0,
            grid=(n_pad // tk,),
            in_specs=[pl.BlockSpec((b_pad, tk), lambda k: (0, k)),
                      pl.BlockSpec((tk, f_hid), lambda k: (k, 0)),
                      pl.BlockSpec(w1.shape, lambda k: (0, 0)),
                      pl.BlockSpec(b1.shape, lambda k: (0, 0)),
                      pl.BlockSpec(w2.shape, lambda k: (0, 0)),
                      pl.BlockSpec(b2.shape, lambda k: (0, 0)),
                      pl.BlockSpec(w3.shape, lambda k: (0, 0)),
                      pl.BlockSpec(b3.shape, lambda k: (0, 0))],
            out_specs=pl.BlockSpec((b_pad, d3), lambda k: (0, 0)),
            scratch_shapes=[pltpu.VMEM((b_pad, f_hid), jnp.float32)]),
        compiler_params=pltpu.CompilerParams(
            dimension_semantics=("arbitrary",),
            vmem_limit_bytes=vmem_limit),
    )(p, h, w1, b1, w2, b2, w3, b3)


# ----------------------------------------------------------------------------
# Plain-JAX glue: graph preprocessing + parameter init / padding + forward
# ----------------------------------------------------------------------------
def build_gcn_adj(edge_index, num_nodes):
    """Dense D^{-1/2}(A + I)D^{-1/2}, matching torch_geometric GCNConv norm."""
    src, dst = edge_index[0], edge_index[1]
    loops = jnp.arange(num_nodes, dtype=src.dtype)
    src = jnp.concatenate([src, loops])
    dst = jnp.concatenate([dst, loops])
    deg = jnp.zeros((num_nodes,), jnp.float32).at[dst].add(1.0)
    dinv = jnp.where(deg > 0, jax.lax.rsqrt(deg), 0.0)
    norm = dinv[src] * dinv[dst]
    return jnp.zeros((num_nodes, num_nodes), jnp.float32).at[dst, src].add(norm)


def build_mean_pool_matrix(batch, num_graphs):
    onehot = (batch[None, :] == jnp.arange(num_graphs)[:, None]).astype(jnp.float32)
    counts = onehot.sum(axis=1, keepdims=True)
    return onehot / jnp.maximum(counts, 1.0)


def init_params(key, input_dim, hidden_dim, dense_hidden_dim, output_dim,
                num_layers, post_mp_layers):
    """Deterministic synthetic parameter init (not a checkpoint load)."""
    params = {"convs": [], "post_mp": []}
    layer_dims = [(input_dim, hidden_dim)] + [(hidden_dim, hidden_dim)] * num_layers
    for (din, dout) in layer_dims:
        key, k1, k2, k3, k4 = jax.random.split(key, 5)
        w = jax.random.normal(k1, (din, dout), jnp.float32) * (1.0 / jnp.sqrt(din))
        b = jax.random.normal(k2, (1, dout), jnp.float32) * 0.01
        gamma = 1.0 + 0.1 * jax.random.normal(k3, (1, dout), jnp.float32)
        beta = 0.1 * jax.random.normal(k4, (1, dout), jnp.float32)
        mean = jnp.zeros((1, dout), jnp.float32)        # BN running stats (eval)
        var = jnp.ones((1, dout), jnp.float32)
        params["convs"].append((w, b, gamma, beta, mean, var))

    dims = ([hidden_dim]
            + [dense_hidden_dim // (2 ** i) for i in range(post_mp_layers - 1)]
            + [output_dim])
    for i in range(len(dims) - 1):
        key, k1, k2 = jax.random.split(key, 3)
        w = jax.random.normal(k1, (dims[i], dims[i + 1]), jnp.float32) * (
            1.0 / jnp.sqrt(dims[i]))
        b = jax.random.normal(k2, (1, dims[i + 1]), jnp.float32) * 0.01
        params["post_mp"].append((w, b))
    return params


def pad_params(params, eps=1e-5):
    """Fold BN(eval) into (scale, shift), pack (bias, scale, shift) into one (8, f)
    operand per conv layer, zero-pad all feature dims to a common 128-lane multiple,
    and cast all MXU weight operands (convs AND post-MP) to bf16."""
    dims = []
    for (w, *_rest) in params["convs"]:
        dims += [w.shape[0], w.shape[1]]
    f_max = _round_up(max(dims), LANE)

    conv_p = []
    for (w, b, gamma, beta, mean, var) in params["convs"]:
        scale = gamma * jax.lax.rsqrt(var + eps)
        shift = beta - mean * scale
        epack = jnp.zeros((8, f_max), jnp.float32)
        epack = epack.at[0, :b.shape[1]].set(b[0])
        epack = epack.at[1, :scale.shape[1]].set(scale[0])
        epack = epack.at[2, :shift.shape[1]].set(shift[0])
        conv_p.append((_pad2(w, f_max, f_max).astype(jnp.bfloat16), epack))

    mlp_p = []
    prev = f_max
    for (w, b) in params["post_mp"]:
        dout_p = _round_up(w.shape[1], LANE)
        mlp_p.append((_pad2(w, prev, dout_p).astype(jnp.bfloat16),
                      _pad2(b, 1, dout_p)))
        prev = dout_p
    return {"convs": conv_p, "post_mp": mlp_p}


def gnn_forward(params_padded, x, edge_index, batch, num_graphs, output_dim,
                force_tiled=False):
    n, _ = x.shape
    f_max = params_padded["convs"][0][0].shape[0]       # all conv weights (f_max,f_max)
    mlp = params_padded["post_mp"]
    assert len(mlp) == 3, "fused post-MP kernel assumes post_mp_layers == 3"

    n_pad = max(LANE, _round_up(n, LANE))
    b_pad = max(16, _round_up(num_graphs, 16))
    vmem_limit = _vmem_limit_bytes()

    a_hat = _pad2(build_gcn_adj(edge_index, n), n_pad, n_pad).astype(jnp.bfloat16)
    h = _pad2(x, n_pad, f_max).astype(jnp.bfloat16)
    p = _pad2(build_mean_pool_matrix(batch, num_graphs), b_pad, n_pad)
    p = p.astype(jnp.bfloat16)
    nvalid = jnp.array([n], jnp.int32)

    conv_ws = [w for (w, _) in params_padded["convs"]]
    conv_es = [e for (_, e) in params_padded["convs"]]
    num_conv = len(conv_ws)
    d3 = mlp[-1][0].shape[1]

    # Estimated fused-kernel VMEM footprint: double-buffered inputs + output + f32 temps.
    fused_bytes = (2 * (a_hat.size * 2 + h.size * 2
                        + num_conv * f_max * f_max * 2 + num_conv * 8 * f_max * 4
                        + p.size * 2
                        + sum(w.size * 2 + b.size * 4 for (w, b) in mlp))
                   + b_pad * d3 * 4 + 4 * n_pad * f_max * 4)

    if (not force_tiled) and fused_bytes <= vmem_limit // 3:
        # Whole network in one kernel: A_hat read from HBM exactly once, no HBM
        # round trips for intermediates, single dispatch.
        conv_w = jnp.stack(conv_ws)            # (L, f_max, f_max) bf16
        conv_e = jnp.stack(conv_es)            # (L, 8, f_max)     f32
        logits = gnn_forward_fused(a_hat, h, conv_w, conv_e, p, mlp, nvalid,
                                   vmem_limit)
    else:
        # Tiled fallback for large graphs: per layer, A_hat streamed once; X and W
        # VMEM-resident; XW k-tile recomputed on the fly; fused epilogue.
        tm = next(t for t in (512, 256, 128) if n_pad % t == 0)
        tk = next(t for t in (2048, 1024, 512, 256, 128) if n_pad % t == 0)
        fixed = 2 * (n_pad * f_max * 2 + f_max * f_max * 2 + 8 * f_max * 4)
        while (fixed + 2 * tm * tk * 2 + tm * f_max * 4 + 2 * tm * f_max * 2
               > vmem_limit // 2) and tk > 128:
            tk //= 2
        for (w, e) in params_padded["convs"]:
            h = gcn_layer_tiled(a_hat, h, w, e, nvalid, tm=tm, tk=tk,
                                vmem_limit=vmem_limit)
        logits = pool_mlp_tiled(p, h, mlp, tk=tk, vmem_limit=vmem_limit)

    return logits[:num_graphs, :output_dim]


def gnn_reference(params, x, edge_index, batch, num_graphs, eps=1e-5):
    """Pure-JAX f32 reference of the PyTorch forward (eval mode)."""
    n = x.shape[0]
    a_hat = build_gcn_adj(edge_index, n)
    h = x
    for (w, b, gamma, beta, mean, var) in params["convs"]:
        h = a_hat @ (h @ w) + b                       # GCNConv
        h = jnp.maximum(h, 0.0)                       # ReLU
        scale = gamma * jax.lax.rsqrt(var + eps)      # BatchNorm1d (eval)
        h = h * scale + (beta - mean * scale)
    g = build_mean_pool_matrix(batch, num_graphs) @ h # global_mean_pool
    for (w, b) in params["post_mp"]:
        g = g @ w + b
    return g


# ----------------------------------------------------------------------------
if __name__ == "__main__":
    # Config consistent with the module's constructor:
    # GNN(input_dim=8, hidden_dim=32, dense_hidden_dim=32, output_dim=4,
    #     dropout=0.0, num_layers=2, gnn_type='GCNConv', heads=1,
    #     norm_type='batchnorm', post_mp_layers=3, pooling_type='mean'), eval().
    input_dim, hidden_dim, dense_hidden_dim, output_dim = 8, 32, 32, 4
    num_layers, post_mp_layers = 2, 3
    num_nodes, num_edges, num_graphs = 16, 24, 2

    key = jax.random.PRNGKey(0)
    kx, ks, kd, kp = jax.random.split(key, 4)

    x = jax.random.normal(kx, (num_nodes, input_dim), jnp.float32)
    src = jax.random.randint(ks, (num_edges,), 0, num_nodes)
    dst = jax.random.randint(kd, (num_edges,), 0, num_nodes)
    edge_index = jnp.stack([src, dst]).astype(jnp.int32)
    batch = jnp.concatenate([
        jnp.zeros(num_nodes // 2, jnp.int32),
        jnp.ones(num_nodes - num_nodes // 2, jnp.int32),
    ])

    params = init_params(kp, input_dim, hidden_dim, dense_hidden_dim, output_dim,
                         num_layers, post_mp_layers)
    params_padded = pad_params(params)

    ref = gnn_reference(params, x, edge_index, batch, num_graphs)

    # Primary path: single fused kernel (everything VMEM-resident).
    fwd = jax.jit(functools.partial(gnn_forward, num_graphs=num_graphs,
                                    output_dim=output_dim))
    logits = jax.block_until_ready(fwd(params_padded, x, edge_index, batch))
    assert logits.shape == (num_graphs, output_dim)
    assert bool(jnp.all(jnp.isfinite(logits)))
    assert bool(jnp.allclose(logits, ref, rtol=1e-1, atol=1e-1)), (
        f"fused path max abs diff {float(jnp.max(jnp.abs(logits - ref)))}")

    # Also exercise the large-graph tiled path once (same small shapes).
    fwd_tiled = jax.jit(functools.partial(gnn_forward, num_graphs=num_graphs,
                                          output_dim=output_dim, force_tiled=True))
    logits_t = jax.block_until_ready(fwd_tiled(params_padded, x, edge_index, batch))
    assert bool(jnp.allclose(logits_t, ref, rtol=1e-1, atol=1e-1)), (
        f"tiled path max abs diff {float(jnp.max(jnp.abs(logits_t - ref)))}")

    print("KERNEL_OK")
</pallas_src>

<mosaic_0001>
module attributes {stable_mosaic.version = 11 : i64} {
  func.func @fused_gnn_kernel(%arg0: i32, %arg1: memref<1xi32, #tpu.memory_space<smem>>, %arg2: memref<128x128xbf16, #tpu.memory_space<vmem>>, %arg3: memref<128x128xbf16, #tpu.memory_space<vmem>>, %arg4: memref<3x128x128xbf16, #tpu.memory_space<vmem>>, %arg5: memref<3x8x128xf32, #tpu.memory_space<vmem>>, %arg6: memref<16x128xbf16, #tpu.memory_space<vmem>>, %arg7: memref<128x128xbf16, #tpu.memory_space<vmem>>, %arg8: memref<1x128xf32, #tpu.memory_space<vmem>>, %arg9: memref<128x128xbf16, #tpu.memory_space<vmem>>, %arg10: memref<1x128xf32, #tpu.memory_space<vmem>>, %arg11: memref<128x128xbf16, #tpu.memory_space<vmem>>, %arg12: memref<1x128xf32, #tpu.memory_space<vmem>>, %arg13: memref<16x128xf32, #tpu.memory_space<vmem>>) attributes {dimension_semantics = [#tpu.dimension_semantics<arbitrary>], iteration_bounds = array<i64: 1>, scalar_prefetch = 1 : i64, scratch_operands = 0 : i64, tpu.core_type = #tpu.core_type<tc>, window_params = [{pipeline_mode = #tpu.pipeline_mode<synchronous>, transform_indices = @transform_0, window_bounds = array<i64: 128, 128>}, {pipeline_mode = #tpu.pipeline_mode<synchronous>, transform_indices = @transform_1, window_bounds = array<i64: 128, 128>}, {pipeline_mode = #tpu.pipeline_mode<synchronous>, transform_indices = @transform_2, window_bounds = array<i64: 3, 128, 128>}, {pipeline_mode = #tpu.pipeline_mode<synchronous>, transform_indices = @transform_3, window_bounds = array<i64: 3, 8, 128>}, {pipeline_mode = #tpu.pipeline_mode<synchronous>, transform_indices = @transform_4, window_bounds = array<i64: 16, 128>}, {pipeline_mode = #tpu.pipeline_mode<synchronous>, transform_indices = @transform_5, window_bounds = array<i64: 128, 128>}, {pipeline_mode = #tpu.pipeline_mode<synchronous>, transform_indices = @transform_6, window_bounds = array<i64: 1, 128>}, {pipeline_mode = #tpu.pipeline_mode<synchronous>, transform_indices = @transform_7, window_bounds = array<i64: 128, 128>}, {pipeline_mode = #tpu.pipeline_mode<synchronous>, transform_indices = @transform_8, window_bounds = array<i64: 1, 128>}, {pipeline_mode = #tpu.pipeline_mode<synchronous>, transform_indices = @transform_9, window_bounds = array<i64: 128, 128>}, {pipeline_mode = #tpu.pipeline_mode<synchronous>, transform_indices = @transform_10, window_bounds = array<i64: 1, 128>}, {pipeline_mode = #tpu.pipeline_mode<synchronous>, transform_indices = @transform_11, window_bounds = array<i64: 16, 128>}]} {
    %0 = tpu.iota {dimensions = array<i32: 0>} : vector<128x128xi32>
    %c0 = arith.constant 0 : index
    %1 = memref.load %arg1[%c0] : memref<1xi32, #tpu.memory_space<smem>>
    %2 = vector.broadcast %1 : i32 to vector<128x128xi32>
    %3 = arith.cmpi slt, %0, %2 : vector<128x128xi32>
    %4 = arith.extui %3 : vector<128x128xi1> to vector<128x128xi32>
    %5 = arith.sitofp %4 : vector<128x128xi32> to vector<128x128xf32>
    %c0_0 = arith.constant 0 : index
    %c0_1 = arith.constant 0 : index
    %6 = vector.load %arg2[%c0_0, %c0_1] : memref<128x128xbf16, #tpu.memory_space<vmem>>, vector<128x128xbf16>
    %c0_2 = arith.constant 0 : index
    %c0_3 = arith.constant 0 : index
    %7 = vector.load %arg3[%c0_2, %c0_3] : memref<128x128xbf16, #tpu.memory_space<vmem>>, vector<128x128xbf16>
    %c0_4 = arith.constant 0 : index
    %c0_5 = arith.constant 0 : index
    %c0_6 = arith.constant 0 : index
    %8 = vector.load %arg4[%c0_4, %c0_5, %c0_6] : memref<3x128x128xbf16, #tpu.memory_space<vmem>>, vector<1x128x128xbf16>
    %9 = vector.shape_cast %8 : vector<1x128x128xbf16> to vector<128x128xbf16>
    %cst = arith.constant dense<0.000000e+00> : vector<128x128xf32>
    %10 = tpu.matmul %7, %9, %cst {dimension_numbers = #tpu.dot_dimension_numbers<[1], [0], [0], [1], [0, 0, 1, 1], [], []>} : vector<128x128xbf16>, vector<128x128xbf16>, vector<128x128xf32> -> vector<128x128xf32>
    %11 = arith.truncf %10 : vector<128x128xf32> to vector<128x128xbf16>
    %cst_7 = arith.constant dense<0.000000e+00> : vector<128x128xf32>
    %12 = tpu.matmul %6, %11, %cst_7 {dimension_numbers = #tpu.dot_dimension_numbers<[1], [0], [0], [1], [0, 0, 1, 1], [], []>} : vector<128x128xbf16>, vector<128x128xbf16>, vector<128x128xf32> -> vector<128x128xf32>
    %c0_8 = arith.constant 0 : index
    %c0_9 = arith.constant 0 : index
    %c0_10 = arith.constant 0 : index
    %13 = vector.load %arg5[%c0_8, %c0_9, %c0_10] : memref<3x8x128xf32, #tpu.memory_space<vmem>>, vector<1x8x128xf32>
    %14 = vector.shape_cast %13 : vector<1x8x128xf32> to vector<8x128xf32>
    %15 = vector.extract_strided_slice %14 {offsets = [0, 0], sizes = [1, 128], strides = [1, 1]} : vector<8x128xf32> to vector<1x128xf32>
    %16 = vector.broadcast %15 : vector<1x128xf32> to vector<128x128xf32>
    %17 = arith.addf %12, %16 : vector<128x128xf32>
    %cst_11 = arith.constant 0.000000e+00 : f32
    %18 = vector.broadcast %cst_11 : f32 to vector<128x128xf32>
    %19 = arith.maximumf %17, %18 : vector<128x128xf32>
    %20 = vector.extract_strided_slice %14 {offsets = [1, 0], sizes = [1, 128], strides = [1, 1]} : vector<8x128xf32> to vector<1x128xf32>
    %21 = vector.broadcast %20 : vector<1x128xf32> to vector<128x128xf32>
    %22 = arith.mulf %19, %21 : vector<128x128xf32>
    %23 = vector.extract_strided_slice %14 {offsets = [2, 0], sizes = [1, 128], strides = [1, 1]} : vector<8x128xf32> to vector<1x128xf32>
    %24 = vector.broadcast %23 : vector<1x128xf32> to vector<128x128xf32>
    %25 = arith.addf %22, %24 : vector<128x128xf32>
    %26 = arith.mulf %25, %5 : vector<128x128xf32>
    %27 = arith.truncf %26 : vector<128x128xf32> to vector<128x128xbf16>
    %c1 = arith.constant 1 : index
    %c0_12 = arith.constant 0 : index
    %c0_13 = arith.constant 0 : index
    %28 = vector.load %arg4[%c1, %c0_12, %c0_13] : memref<3x128x128xbf16, #tpu.memory_space<vmem>>, vector<1x128x128xbf16>
    %29 = vector.shape_cast %28 : vector<1x128x128xbf16> to vector<128x128xbf16>
    %cst_14 = arith.constant dense<0.000000e+00> : vector<128x128xf32>
    %30 = tpu.matmul %27, %29, %cst_14 {dimension_numbers = #tpu.dot_dimension_numbers<[1], [0], [0], [1], [0, 0, 1, 1], [], []>} : vector<128x128xbf16>, vector<128x128xbf16>, vector<128x128xf32> -> vector<128x128xf32>
    %31 = arith.truncf %30 : vector<128x128xf32> to vector<128x128xbf16>
    %cst_15 = arith.constant dense<0.000000e+00> : vector<128x128xf32>
    %32 = tpu.matmul %6, %31, %cst_15 {dimension_numbers = #tpu.dot_dimension_numbers<[1], [0], [0], [1], [0, 0, 1, 1], [], []>} : vector<128x128xbf16>, vector<128x128xbf16>, vector<128x128xf32> -> vector<128x128xf32>
    %c1_16 = arith.constant 1 : index
    %c0_17 = arith.constant 0 : index
    %c0_18 = arith.constant 0 : index
    %33 = vector.load %arg5[%c1_16, %c0_17, %c0_18] : memref<3x8x128xf32, #tpu.memory_space<vmem>>, vector<1x8x128xf32>
    %34 = vector.shape_cast %33 : vector<1x8x128xf32> to vector<8x128xf32>
    %35 = vector.extract_strided_slice %34 {offsets = [0, 0], sizes = [1, 128], strides = [1, 1]} : vector<8x128xf32> to vector<1x128xf32>
    %36 = vector.broadcast %35 : vector<1x128xf32> to vector<128x128xf32>
    %37 = arith.addf %32, %36 : vector<128x128xf32>
    %cst_19 = arith.constant 0.000000e+00 : f32
    %38 = vector.broadcast %cst_19 : f32 to vector<128x128xf32>
    %39 = arith.maximumf %37, %38 : vector<128x128xf32>
    %40 = vector.extract_strided_slice %34 {offsets = [1, 0], sizes = [1, 128], strides = [1, 1]} : vector<8x128xf32> to vector<1x128xf32>
    %41 = vector.broadcast %40 : vector<1x128xf32> to vector<128x128xf32>
    %42 = arith.mulf %39, %41 : vector<128x128xf32>
    %43 = vector.extract_strided_slice %34 {offsets = [2, 0], sizes = [1, 128], strides = [1, 1]} : vector<8x128xf32> to vector<1x128xf32>
    %44 = vector.broadcast %43 : vector<1x128xf32> to vector<128x128xf32>
    %45 = arith.addf %42, %44 : vector<128x128xf32>
    %46 = arith.mulf %45, %5 : vector<128x128xf32>
    %47 = arith.truncf %46 : vector<128x128xf32> to vector<128x128xbf16>
    %c2 = arith.constant 2 : index
    %c0_20 = arith.constant 0 : index
    %c0_21 = arith.constant 0 : index
    %48 = vector.load %arg4[%c2, %c0_20, %c0_21] : memref<3x128x128xbf16, #tpu.memory_space<vmem>>, vector<1x128x128xbf16>
    %49 = vector.shape_cast %48 : vector<1x128x128xbf16> to vector<128x128xbf16>
    %cst_22 = arith.constant dense<0.000000e+00> : vector<128x128xf32>
    %50 = tpu.matmul %47, %49, %cst_22 {dimension_numbers = #tpu.dot_dimension_numbers<[1], [0], [0], [1], [0, 0, 1, 1], [], []>} : vector<128x128xbf16>, vector<128x128xbf16>, vector<128x128xf32> -> vector<128x128xf32>
    %51 = arith.truncf %50 : vector<128x128xf32> to vector<128x128xbf16>
    %cst_23 = arith.constant dense<0.000000e+00> : vector<128x128xf32>
    %52 = tpu.matmul %6, %51, %cst_23 {dimension_numbers = #tpu.dot_dimension_numbers<[1], [0], [0], [1], [0, 0, 1, 1], [], []>} : vector<128x128xbf16>, vector<128x128xbf16>, vector<128x128xf32> -> vector<128x128xf32>
    %c2_24 = arith.constant 2 : index
    %c0_25 = arith.constant 0 : index
    %c0_26 = arith.constant 0 : index
    %53 = vector.load %arg5[%c2_24, %c0_25, %c0_26] : memref<3x8x128xf32, #tpu.memory_space<vmem>>, vector<1x8x128xf32>
    %54 = vector.shape_cast %53 : vector<1x8x128xf32> to vector<8x128xf32>
    %55 = vector.extract_strided_slice %54 {offsets = [0, 0], sizes = [1, 128], strides = [1, 1]} : vector<8x128xf32> to vector<1x128xf32>
    %56 = vector.broadcast %55 : vector<1x128xf32> to vector<128x128xf32>
    %57 = arith.addf %52, %56 : vector<128x128xf32>
    %cst_27 = arith.constant 0.000000e+00 : f32
    %58 = vector.broadcast %cst_27 : f32 to vector<128x128xf32>
    %59 = arith.maximumf %57, %58 : vector<128x128xf32>
    %60 = vector.extract_strided_slice %54 {offsets = [1, 0], sizes = [1, 128], strides = [1, 1]} : vector<8x128xf32> to vector<1x128xf32>
    %61 = vector.broadcast %60 : vector<1x128xf32> to vector<128x128xf32>
    %62 = arith.mulf %59, %61 : vector<128x128xf32>
    %63 = vector.extract_strided_slice %54 {offsets = [2, 0], sizes = [1, 128], strides = [1, 1]} : vector<8x128xf32> to vector<1x128xf32>
    %64 = vector.broadcast %63 : vector<1x128xf32> to vector<128x128xf32>
    %65 = arith.addf %62, %64 : vector<128x128xf32>
    %66 = arith.mulf %65, %5 : vector<128x128xf32>
    %67 = arith.truncf %66 : vector<128x128xf32> to vector<128x128xbf16>
    %c0_28 = arith.constant 0 : index
    %c0_29 = arith.constant 0 : index
    %68 = vector.load %arg6[%c0_28, %c0_29] : memref<16x128xbf16, #tpu.memory_space<vmem>>, vector<16x128xbf16>
    %cst_30 = arith.constant dense<0.000000e+00> : vector<16x128xf32>
    %69 = tpu.matmul %68, %67, %cst_30 {dimension_numbers = #tpu.dot_dimension_numbers<[1], [0], [0], [1], [0, 0, 1, 1], [], []>} : vector<16x128xbf16>, vector<128x128xbf16>, vector<16x128xf32> -> vector<16x128xf32>
    %70 = arith.truncf %69 : vector<16x128xf32> to vector<16x128xbf16>
    %c0_31 = arith.constant 0 : index
    %c0_32 = arith.constant 0 : index
    %71 = vector.load %arg7[%c0_31, %c0_32] : memref<128x128xbf16, #tpu.memory_space<vmem>>, vector<128x128xbf16>
    %cst_33 = arith.constant dense<0.000000e+00> : vector<16x128xf32>
    %72 = tpu.matmul %70, %71, %cst_33 {dimension_numbers = #tpu.dot_dimension_numbers<[1], [0], [0], [1], [0, 0, 1, 1], [], []>} : vector<16x128xbf16>, vector<128x128xbf16>, vector<16x128xf32> -> vector<16x128xf32>
    %c0_34 = arith.constant 0 : index
    %c0_35 = arith.constant 0 : index
    %73 = vector.load %arg8[%c0_34, %c0_35] : memref<1x128xf32, #tpu.memory_space<vmem>>, vector<1x128xf32>
    %74 = vector.broadcast %73 : vector<1x128xf32> to vector<16x128xf32>
    %75 = arith.addf %72, %74 : vector<16x128xf32>
    %76 = arith.truncf %75 : vector<16x128xf32> to vector<16x128xbf16>
    %c0_36 = arith.constant 0 : index
    %c0_37 = arith.constant 0 : index
    %77 = vector.load %arg9[%c0_36, %c0_37] : memref<128x128xbf16, #tpu.memory_space<vmem>>, vector<128x128xbf16>
    %cst_38 = arith.constant dense<0.000000e+00> : vector<16x128xf32>
    %78 = tpu.matmul %76, %77, %cst_38 {dimension_numbers = #tpu.dot_dimension_numbers<[1], [0], [0], [1], [0, 0, 1, 1], [], []>} : vector<16x128xbf16>, vector<128x128xbf16>, vector<16x128xf32> -> vector<16x128xf32>
    %c0_39 = arith.constant 0 : index
    %c0_40 = arith.constant 0 : index
    %79 = vector.load %arg10[%c0_39, %c0_40] : memref<1x128xf32, #tpu.memory_space<vmem>>, vector<1x128xf32>
    %80 = vector.broadcast %79 : vector<1x128xf32> to vector<16x128xf32>
    %81 = arith.addf %78, %80 : vector<16x128xf32>
    %82 = arith.truncf %81 : vector<16x128xf32> to vector<16x128xbf16>
    %c0_41 = arith.constant 0 : index
    %c0_42 = arith.constant 0 : index
    %83 = vector.load %arg11[%c0_41, %c0_42] : memref<128x128xbf16, #tpu.memory_space<vmem>>, vector<128x128xbf16>
    %cst_43 = arith.constant dense<0.000000e+00> : vector<16x128xf32>
    %84 = tpu.matmul %82, %83, %cst_43 {dimension_numbers = #tpu.dot_dimension_numbers<[1], [0], [0], [1], [0, 0, 1, 1], [], []>} : vector<16x128xbf16>, vector<128x128xbf16>, vector<16x128xf32> -> vector<16x128xf32>
    %c0_44 = arith.constant 0 : index
    %c0_45 = arith.constant 0 : index
    %85 = vector.load %arg12[%c0_44, %c0_45] : memref<1x128xf32, #tpu.memory_space<vmem>>, vector<1x128xf32>
    %86 = vector.broadcast %85 : vector<1x128xf32> to vector<16x128xf32>
    %87 = arith.addf %84, %86 : vector<16x128xf32>
    %c0_46 = arith.constant 0 : index
    %c0_47 = arith.constant 0 : index
    %88 = vector.load %arg13[%c0_46, %c0_47] : memref<16x128xf32, #tpu.memory_space<vmem>>, vector<16x128xf32>
    tpu.vector_store %arg13[%c0_46, %c0_47], %87 {strides = array<i32>} : memref<16x128xf32, #tpu.memory_space<vmem>>, vector<16x128xf32>,
    return
  }
  func.func @transform_0(%arg0: i32, %arg1: memref<1xi32, #tpu.memory_space<smem>>) -> (i32, i32) {
    %c0_i32 = arith.constant 0 : i32
    %c0_i32_0 = arith.constant 0 : i32
    %c0_i32_1 = arith.constant 0 : i32
    return %c0_i32, %c0_i32_0 : i32, i32
  }
  func.func @transform_1(%arg0: i32, %arg1: memref<1xi32, #tpu.memory_space<smem>>) -> (i32, i32) {
    %c0_i32 = arith.constant 0 : i32
    %c0_i32_0 = arith.constant 0 : i32
    %c0_i32_1 = arith.constant 0 : i32
    return %c0_i32, %c0_i32_0 : i32, i32
  }
  func.func @transform_2(%arg0: i32, %arg1: memref<1xi32, #tpu.memory_space<smem>>) -> (i32, i32, i32) {
    %c0_i32 = arith.constant 0 : i32
    %c0_i32_0 = arith.constant 0 : i32
    %c0_i32_1 = arith.constant 0 : i32
    %c0_i32_2 = arith.constant 0 : i32
    return %c0_i32, %c0_i32_0, %c0_i32_1 : i32, i32, i32
  }
  func.func @transform_3(%arg0: i32, %arg1: memref<1xi32, #tpu.memory_space<smem>>) -> (i32, i32, i32) {
    %c0_i32 = arith.constant 0 : i32
    %c0_i32_0 = arith.constant 0 : i32
    %c0_i32_1 = arith.constant 0 : i32
    %c0_i32_2 = arith.constant 0 : i32
    return %c0_i32, %c0_i32_0, %c0_i32_1 : i32, i32, i32
  }
  func.func @transform_4(%arg0: i32, %arg1: memref<1xi32, #tpu.memory_space<smem>>) -> (i32, i32) {
    %c0_i32 = arith.constant 0 : i32
    %c0_i32_0 = arith.constant 0 : i32
    %c0_i32_1 = arith.constant 0 : i32
    return %c0_i32, %c0_i32_0 : i32, i32
  }
  func.func @transform_5(%arg0: i32, %arg1: memref<1xi32, #tpu.memory_space<smem>>) -> (i32, i32) {
    %c0_i32 = arith.constant 0 : i32
    %c0_i32_0 = arith.constant 0 : i32
    %c0_i32_1 = arith.constant 0 : i32
    return %c0_i32, %c0_i32_0 : i32, i32
  }
  func.func @transform_6(%arg0: i32, %arg1: memref<1xi32, #tpu.memory_space<smem>>) -> (i32, i32) {
    %c0_i32 = arith.constant 0 : i32
    %c0_i32_0 = arith.constant 0 : i32
    %c0_i32_1 = arith.constant 0 : i32
    return %c0_i32, %c0_i32_0 : i32, i32
  }
  func.func @transform_7(%arg0: i32, %arg1: memref<1xi32, #tpu.memory_space<smem>>) -> (i32, i32) {
    %c0_i32 = arith.constant 0 : i32
    %c0_i32_0 = arith.constant 0 : i32
    %c0_i32_1 = arith.constant 0 : i32
    return %c0_i32, %c0_i32_0 : i32, i32
  }
  func.func @transform_8(%arg0: i32, %arg1: memref<1xi32, #tpu.memory_space<smem>>) -> (i32, i32) {
    %c0_i32 = arith.constant 0 : i32
    %c0_i32_0 = arith.constant 0 : i32
    %c0_i32_1 = arith.constant 0 : i32
    return %c0_i32, %c0_i32_0 : i32, i32
  }
  func.func @transform_9(%arg0: i32, %arg1: memref<1xi32, #tpu.memory_space<smem>>) -> (i32, i32) {
    %c0_i32 = arith.constant 0 : i32
    %c0_i32_0 = arith.constant 0 : i32
    %c0_i32_1 = arith.constant 0 : i32
    return %c0_i32, %c0_i32_0 : i32, i32
  }
  func.func @transform_10(%arg0: i32, %arg1: memref<1xi32, #tpu.memory_space<smem>>) -> (i32, i32) {
    %c0_i32 = arith.constant 0 : i32
    %c0_i32_0 = arith.constant 0 : i32
    %c0_i32_1 = arith.constant 0 : i32
    return %c0_i32, %c0_i32_0 : i32, i32
  }
  func.func @transform_11(%arg0: i32, %arg1: memref<1xi32, #tpu.memory_space<smem>>) -> (i32, i32) {
    %c0_i32 = arith.constant 0 : i32
    %c0_i32_0 = arith.constant 0 : i32
    %c0_i32_1 = arith.constant 0 : i32
    return %c0_i32, %c0_i32_0 : i32, i32
  }
}

</mosaic_0001>

<llo_original>
// kernel: mul.1
$region0: #{mul.1}
  #allocation0 [shape = 's32[1]{0}', space=sflag, size = 0x4, scoped, tag = 'scoped memory for mul.1']
  %s0 = inlined_call_operand.vmem [shape: f32[40], index: 0, kind: input, shape index: {}]
  %s1 = inlined_call_operand.vmem [shape: f32[40], index: 1, kind: input, shape index: {}]
  %s2 = inlined_call_operand.vmem [shape: f32[40], index: 2, kind: output, shape index: {}]
  %v3 = vld [vmem:[%s0] sm:$0x1]
  %v4 = vld [vmem:[%s1] sm:$0x1]
  %5 = xla_tuple %v3, %v4
  %6 = xla_tuple %5
  %v7 = vmul.f32 %v3, %v4
  %8 = xla_tuple %v7
  %9 = vst [vmem:[%s2] sm:$0x1] %v7

// kernel: gnn_forward.1
$region0: #{gnn_forward.1}
  #allocation0 [shape = 'u32[]', space=smem, size = 0x4, offset = 0x4, fixed_abs, tag = 'smem constant byte address 0x4 - core index']
  #allocation1 [shape = 'u32[144,128]{1,0:T(1,128)}', space=vmem, size = 0x12000, scoped, tag = 'internal scratch']
  #allocation2 [shape = 's32[1]{0}', space=sflag, size = 0x4, scoped, tag = 'scoped memory for gnn_forward.1']
  #allocation3 [shape = 's32[1]{0:T(128)S(6)}', space=smem, size = 0x200, scoped, tag = 'prefetched SMEM operand 0']
  %s0 = inlined_call_operand.<no memory space> [shape: s32[1], index: 0, kind: input, shape index: {}]
  %s1 = inlined_call_operand.vmem [shape: bf16[128,128], index: 1, kind: input, shape index: {}]
  %s2 = inlined_call_operand.vmem [shape: bf16[128,128], index: 2, kind: input, shape index: {}]
  %s3 = inlined_call_operand.vmem [shape: bf16[3,128,128], index: 3, kind: input, shape index: {}]
  %s4 = inlined_call_operand.vmem [shape: f32[3,8,128], index: 4, kind: input, shape index: {}]
  %s5 = inlined_call_operand.vmem [shape: bf16[16,128], index: 5, kind: input, shape index: {}]
  %s6 = inlined_call_operand.vmem [shape: bf16[128,128], index: 6, kind: input, shape index: {}]
  %s7 = inlined_call_operand.vmem [shape: f32[1,128], index: 7, kind: input, shape index: {}]
  %s8 = inlined_call_operand.vmem [shape: bf16[128,128], index: 8, kind: input, shape index: {}]
  %s9 = inlined_call_operand.vmem [shape: f32[1,128], index: 9, kind: input, shape index: {}]
  %s10 = inlined_call_operand.vmem [shape: bf16[128,128], index: 10, kind: input, shape index: {}]
  %s11 = inlined_call_operand.vmem [shape: f32[1,128], index: 11, kind: input, shape index: {}]
  %s12 = inlined_call_operand.vmem [shape: f32[16,128], index: 12, kind: output, shape index: {}]
  %s13 = sld [smem:[#allocation0]]
  $region54: #{gnn_forward.1} parent=0
    _
  %s15 = ssub.s32 1, %s13
  %s16 = scalar_select 0, %s15, %s13
  %17 = sst [smem:[#allocation3]] %s0
  // Predicated region
  $region2: #{gnn_forward.1} parent=0 // pred_check
    _
  $region3: #{gnn_forward.1} parent=0 // pred_check_branch
    %19 = sbr.rel (0) target = $region5
  $region4: #{gnn_forward.1} parent=0 // pred_region
    _
  $region5: #{gnn_forward.1} parent=0 // pred_fallthru
    _
  // Predicated region
  $region6: #{gnn_forward.1} parent=0 // pred_check
    _
  $region7: #{gnn_forward.1} parent=0 // pred_check_branch
    %21 = sbr.rel (0) target = $region9
  $region8: #{gnn_forward.1} parent=0 // pred_region
    _
  $region9: #{gnn_forward.1} parent=0 // pred_fallthru
    _
  // Predicated region
  $region10: #{gnn_forward.1} parent=0 // pred_check
    _
  $region11: #{gnn_forward.1} parent=0 // pred_check_branch
    %23 = sbr.rel (0) target = $region13
  $region12: #{gnn_forward.1} parent=0 // pred_region
    _
  $region13: #{gnn_forward.1} parent=0 // pred_fallthru
    _
  // Predicated region
  $region14: #{gnn_forward.1} parent=0 // pred_check
    _
  $region15: #{gnn_forward.1} parent=0 // pred_check_branch
    %25 = sbr.rel (0) target = $region17
  $region16: #{gnn_forward.1} parent=0 // pred_region
    _
  $region17: #{gnn_forward.1} parent=0 // pred_fallthru
    _
  // Predicated region
  $region18: #{gnn_forward.1} parent=0 // pred_check
    _
  $region19: #{gnn_forward.1} parent=0 // pred_check_branch
    %27 = sbr.rel (0) target = $region21
  $region20: #{gnn_forward.1} parent=0 // pred_region
    _
  $region21: #{gnn_forward.1} parent=0 // pred_fallthru
    _
  // Predicated region
  $region22: #{gnn_forward.1} parent=0 // pred_check
    _
  $region23: #{gnn_forward.1} parent=0 // pred_check_branch
    %29 = sbr.rel (0) target = $region25
  $region24: #{gnn_forward.1} parent=0 // pred_region
    _
  $region25: #{gnn_forward.1} parent=0 // pred_fallthru
    _
  // Predicated region
  $region26: #{gnn_forward.1} parent=0 // pred_check
    _
  $region27: #{gnn_forward.1} parent=0 // pred_check_branch
    %31 = sbr.rel (0) target = $region29
  $region28: #{gnn_forward.1} parent=0 // pred_region
    _
  $region29: #{gnn_forward.1} parent=0 // pred_fallthru
    _
  // Predicated region
  $region30: #{gnn_forward.1} parent=0 // pred_check
    _
  $region31: #{gnn_forward.1} parent=0 // pred_check_branch
    %33 = sbr.rel (0) target = $region33
  $region32: #{gnn_forward.1} parent=0 // pred_region
    _
  $region33: #{gnn_forward.1} parent=0 // pred_fallthru
    _
  // Predicated region
  $region34: #{gnn_forward.1} parent=0 // pred_check
    _
  $region35: #{gnn_forward.1} parent=0 // pred_check_branch
    %35 = sbr.rel (0) target = $region37
  $region36: #{gnn_forward.1} parent=0 // pred_region
    _
  $region37: #{gnn_forward.1} parent=0 // pred_fallthru
    _
  // Predicated region
  $region38: #{gnn_forward.1} parent=0 // pred_check
    _
  $region39: #{gnn_forward.1} parent=0 // pred_check_branch
    %37 = sbr.rel (0) target = $region41
  $region40: #{gnn_forward.1} parent=0 // pred_region
    _
  $region41: #{gnn_forward.1} parent=0 // pred_fallthru
    _
  // Predicated region
  $region42: #{gnn_forward.1} parent=0 // pred_check
    _
  $region43: #{gnn_forward.1} parent=0 // pred_check_branch
    %39 = sbr.rel (0) target = $region45
  $region44: #{gnn_forward.1} parent=0 // pred_region
    _
  $region45: #{gnn_forward.1} parent=0 // pred_fallthru
    _
  %v41 = vlaneseq
  %v42 = vshrl.u32 %v41, 7
  %v43 = vadd.s32 %v42, 8
  %v44 = vadd.s32 %v42, 16
  %v45 = vadd.s32 %v42, 24
  %v46 = vadd.s32 %v42, 32
  %v47 = vadd.s32 %v42, 40
  %v48 = vadd.s32 %v42, 48
  %v49 = vadd.s32 %v42, 56
  %v50 = vadd.s32 %v42, 64
  %v51 = vadd.s32 %v42, 72
  %v52 = vadd.s32 %v42, 80
  %v53 = vadd.s32 %v42, 88
  %v54 = vadd.s32 %v42, 96
  %v55 = vadd.s32 %v42, 104
  %v56 = vadd.s32 %v42, 112
  %v57 = vadd.s32 %v42, 120
  %s58 = sld [smem:[#allocation3]]
  %v59 = vstv %s58
  %vm60 = vcmp.lt.s32.totalorder %v42, %v59
  %vm61 = vcmp.lt.s32.totalorder %v43, %v59
  %vm62 = vcmp.lt.s32.totalorder %v44, %v59
  %vm63 = vcmp.lt.s32.totalorder %v45, %v59
  %vm64 = vcmp.lt.s32.totalorder %v46, %v59
  %vm65 = vcmp.lt.s32.totalorder %v47, %v59
  %vm66 = vcmp.lt.s32.totalorder %v48, %v59
  %vm67 = vcmp.lt.s32.totalorder %v49, %v59
  %vm68 = vcmp.lt.s32.totalorder %v50, %v59
  %vm69 = vcmp.lt.s32.totalorder %v51, %v59
  %vm70 = vcmp.lt.s32.totalorder %v52, %v59
  %vm71 = vcmp.lt.s32.totalorder %v53, %v59
  %vm72 = vcmp.lt.s32.totalorder %v54, %v59
  %vm73 = vcmp.lt.s32.totalorder %v55, %v59
  %vm74 = vcmp.lt.s32.totalorder %v56, %v59
  %vm75 = vcmp.lt.s32.totalorder %v57, %v59
  %v76 = vsel %vm60, 1, 0
  %v77 = vsel %vm61, 1, 0
  %v78 = vsel %vm62, 1, 0
  %v79 = vsel %vm63, 1, 0
  %v80 = vsel %vm64, 1, 0
  %v81 = vsel %vm65, 1, 0
  %v82 = vsel %vm66, 1, 0
  %v83 = vsel %vm67, 1, 0
  %v84 = vsel %vm68, 1, 0
  %v85 = vsel %vm69, 1, 0
  %v86 = vsel %vm70, 1, 0
  %v87 = vsel %vm71, 1, 0
  %v88 = vsel %vm72, 1, 0
  %v89 = vsel %vm73, 1, 0
  %v90 = vsel %vm74, 1, 0
  %v91 = vsel %vm75, 1, 0
  %v92 = vcvt.s32.f32 %v76
  %v93 = vcvt.s32.f32 %v77
  %v94 = vcvt.s32.f32 %v78
  %v95 = vcvt.s32.f32 %v79
  %v96 = vcvt.s32.f32 %v80
  %v97 = vcvt.s32.f32 %v81
  %v98 = vcvt.s32.f32 %v82
  %v99 = vcvt.s32.f32 %v83
  %v100 = vcvt.s32.f32 %v84
  %v101 = vcvt.s32.f32 %v85
  %v102 = vcvt.s32.f32 %v86
  %v103 = vcvt.s32.f32 %v87
  %v104 = vcvt.s32.f32 %v88
  %v105 = vcvt.s32.f32 %v89
  %v106 = vcvt.s32.f32 %v90
  %v107 = vcvt.s32.f32 %v91
  %v108 = vld [vmem:[%s1] sm:$0xf]
  %v109 = vld [vmem:[%s1 + $0x4] sm:$0xf]
  %v110 = vld [vmem:[%s1 + $0x8] sm:$0xf]
  %v111 = vld [vmem:[%s1 + $0xc] sm:$0xf]
  %v112 = vld [vmem:[%s1 + $0x10] sm:$0xf]
  %v113 = vld [vmem:[%s1 + $0x14] sm:$0xf]
  %v114 = vld [vmem:[%s1 + $0x18] sm:$0xf]
  %v115 = vld [vmem:[%s1 + $0x1c] sm:$0xf]
  %v116 = vld [vmem:[%s1 + $0x20] sm:$0xf]
  %v117 = vld [vmem:[%s1 + $0x24] sm:$0xf]
  %v118 = vld [vmem:[%s1 + $0x28] sm:$0xf]
  %v119 = vld [vmem:[%s1 + $0x2c] sm:$0xf]
  %v120 = vld [vmem:[%s1 + $0x30] sm:$0xf]
  %v121 = vld [vmem:[%s1 + $0x34] sm:$0xf]
  %v122 = vld [vmem:[%s1 + $0x38] sm:$0xf]
  %v123 = vld [vmem:[%s1 + $0x3c] sm:$0xf]
  %v124 = vld [vmem:[%s2] sm:$0xf]
  %v125 = vld [vmem:[%s2 + $0x4] sm:$0xf]
  %v126 = vld [vmem:[%s2 + $0x8] sm:$0xf]
  %v127 = vld [vmem:[%s2 + $0xc] sm:$0xf]
  %v128 = vld [vmem:[%s2 + $0x10] sm:$0xf]
  %v129 = vld [vmem:[%s2 + $0x14] sm:$0xf]
  %v130 = vld [vmem:[%s2 + $0x18] sm:$0xf]
  %v131 = vld [vmem:[%s2 + $0x1c] sm:$0xf]
  %v132 = vld [vmem:[%s2 + $0x20] sm:$0xf]
  %v133 = vld [vmem:[%s2 + $0x24] sm:$0xf]
  %v134 = vld [vmem:[%s2 + $0x28] sm:$0xf]
  %v135 = vld [vmem:[%s2 + $0x2c] sm:$0xf]
  %v136 = vld [vmem:[%s2 + $0x30] sm:$0xf]
  %v137 = vld [vmem:[%s2 + $0x34] sm:$0xf]
  %v138 = vld [vmem:[%s2 + $0x38] sm:$0xf]
  %v139 = vld [vmem:[%s2 + $0x3c] sm:$0xf]
  %v140 = vld [vmem:[%s3] sm:$0xf]
  %v141 = vld [vmem:[%s3 + $0x4] sm:$0xf]
  %v142 = vld [vmem:[%s3 + $0x8] sm:$0xf]
  %v143 = vld [vmem:[%s3 + $0xc] sm:$0xf]
  %v144 = vld [vmem:[%s3 + $0x10] sm:$0xf]
  %v145 = vld [vmem:[%s3 + $0x14] sm:$0xf]
  %v146 = vld [vmem:[%s3 + $0x18] sm:$0xf]
  %v147 = vld [vmem:[%s3 + $0x1c] sm:$0xf]
  %v148 = vld [vmem:[%s3 + $0x20] sm:$0xf]
  %v149 = vld [vmem:[%s3 + $0x24] sm:$0xf]
  %v150 = vld [vmem:[%s3 + $0x28] sm:$0xf]
  %v151 = vld [vmem:[%s3 + $0x2c] sm:$0xf]
  %v152 = vld [vmem:[%s3 + $0x30] sm:$0xf]
  %v153 = vld [vmem:[%s3 + $0x34] sm:$0xf]
  %v154 = vld [vmem:[%s3 + $0x38] sm:$0xf]
  %v155 = vld [vmem:[%s3 + $0x3c] sm:$0xf]
  %v172 = vunpack.c.l.b16 %v124
  %v173 = vunpack.c.l.b16 %v125
  %v174 = vunpack.c.l.b16 %v126
  %v175 = vunpack.c.l.b16 %v127
  %v176 = vunpack.c.l.b16 %v128
  %v177 = vunpack.c.l.b16 %v129
  %v178 = vunpack.c.l.b16 %v130
  %v179 = vunpack.c.l.b16 %v131
  %v180 = vunpack.c.l.b16 %v132
  %v181 = vunpack.c.l.b16 %v133
  %v182 = vunpack.c.l.b16 %v134
  %v183 = vunpack.c.l.b16 %v135
  %v184 = vunpack.c.l.b16 %v136
  %v185 = vunpack.c.l.b16 %v137
  %v186 = vunpack.c.l.b16 %v138
  %v187 = vunpack.c.l.b16 %v139
  %v188 = vpack.c.b16 %v173, %v172
  %v189 = vpack.c.b16 %v175, %v174
  %v190 = vpack.c.b16 %v177, %v176
  %v191 = vpack.c.b16 %v179, %v178
  %v192 = vpack.c.b16 %v181, %v180
  %v193 = vpack.c.b16 %v183, %v182
  %v194 = vpack.c.b16 %v185, %v184
  %v195 = vpack.c.b16 %v187, %v186
  %v220 = vunpack.c.l.b16 %v140
  %v221 = vunpack.c.l.b16 %v141
  %v222 = vunpack.c.l.b16 %v142
  %v223 = vunpack.c.l.b16 %v143
  %v224 = vunpack.c.l.b16 %v144
  %v225 = vunpack.c.l.b16 %v145
  %v226 = vunpack.c.l.b16 %v146
  %v227 = vunpack.c.l.b16 %v147
  %v228 = vunpack.c.l.b16 %v148
  %v229 = vunpack.c.l.b16 %v149
  %v230 = vunpack.c.l.b16 %v150
  %v231 = vunpack.c.l.b16 %v151
  %v232 = vunpack.c.l.b16 %v152
  %v233 = vunpack.c.l.b16 %v153
  %v234 = vunpack.c.l.b16 %v154
  %v235 = vunpack.c.l.b16 %v155
  %v236 = vpack.c.b16 %v221, %v220
  %v237 = vpack.c.b16 %v223, %v222
  %v238 = vpack.c.b16 %v225, %v224
  %v239 = vpack.c.b16 %v227, %v226
  %v240 = vpack.c.b16 %v229, %v228
  %v241 = vpack.c.b16 %v231, %v230
  %v242 = vpack.c.b16 %v233, %v232
  %v243 = vpack.c.b16 %v235, %v234
  %252 = vmatprep.subr.bf16.mxu0 0
  %253 = vmatpush1.bf16.msra.mxu0 %v236
  %254 = vmatprep.subr.bf16.mxu0 0
  %255 = vmatpush1.bf16.msra.mxu0 %v237
  %256 = vmatprep.subr.bf16.mxu0 0
  %257 = vmatpush1.bf16.msra.mxu0 %v238
  %258 = vmatprep.subr.bf16.mxu0 0
  %259 = vmatpush1.bf16.msra.mxu0 %v239
  %260 = vmatprep.subr.bf16.mxu0 0
  %261 = vmatpush1.bf16.msra.mxu0 %v240
  %262 = vmatprep.subr.bf16.mxu0 0
  %263 = vmatpush1.bf16.msra.mxu0 %v241
  %264 = vmatprep.subr.bf16.mxu0 0
  %265 = vmatpush1.bf16.msra.mxu0 %v242
  %266 = vmatprep.subr.bf16.mxu0 0
  %267 = vmatpush1.bf16.msra.mxu0 %v243
  %268 = vmatprep.subr.bf16.mxu0 0
  %269 = vmatpush1.bf16.msra.mxu0 0
  %270 = vmatprep.subr.bf16.mxu0 0
  %271 = vmatpush1.bf16.msra.mxu0 0
  %272 = vmatprep.subr.bf16.mxu0 0
  %273 = vmatpush1.bf16.msra.mxu0 0
  %274 = vmatprep.subr.bf16.mxu0 0
  %275 = vmatpush1.bf16.msra.mxu0 0
  %276 = vmatprep.subr.bf16.mxu0 0
  %277 = vmatpush1.bf16.msra.mxu0 0
  %278 = vmatprep.subr.bf16.mxu0 0
  %279 = vmatpush1.bf16.msra.mxu0 0
  %280 = vmatprep.subr.bf16.mxu0 0
  %281 = vmatpush1.bf16.msra.mxu0 0
  %282 = vmatprep.subr.bf16.mxu0 0
  %283 = vmatpush1.bf16.msra.mxu0 0
  %284 = vmatprep.mubr.bf16.mxu0 0
  %285 = vmatmul.mubr.bf16.gmra.mrb[0].mxu0 %v188
  %v286 = vpop.f32.mrb[0].mxu0
  %v287 = vadd.f32 0.0, %v286
  %v288 = vpop.f32.mrb[0].mxu0
  %v289 = vpop.f32.mrb[0].mxu0
  %v290 = vadd.f32 0.0, %v289
  %v291 = vpop.f32.mrb[0].mxu0
  %292 = vmatprep.mubr.bf16.mxu0 0
  %293 = vmatmul.mubr.bf16.gmra.mrb[0].mxu0 %v189
  %v294 = vpop.f32.mrb[0].mxu0
  %v295 = vadd.f32 0.0, %v294
  %v296 = vpop.f32.mrb[0].mxu0
  %v297 = vpop.f32.mrb[0].mxu0
  %v298 = vadd.f32 0.0, %v297
  %v299 = vpop.f32.mrb[0].mxu0
  %300 = vmatprep.mubr.bf16.mxu0 0
  %301 = vmatmul.mubr.bf16.gmra.mrb[0].mxu0 %v190
  %v302 = vpop.f32.mrb[0].mxu0
  %v303 = vadd.f32 0.0, %v302
  %v304 = vpop.f32.mrb[0].mxu0
  %v305 = vpop.f32.mrb[0].mxu0
  %v306 = vadd.f32 0.0, %v305
  %v307 = vpop.f32.mrb[0].mxu0
  %308 = vmatprep.mubr.bf16.mxu0 0
  %309 = vmatmul.mubr.bf16.gmra.mrb[0].mxu0 %v191
  %v310 = vpop.f32.mrb[0].mxu0
  %v311 = vadd.f32 0.0, %v310
  %v312 = vpop.f32.mrb[0].mxu0
  %v313 = vpop.f32.mrb[0].mxu0
  %v314 = vadd.f32 0.0, %v313
  %v315 = vpop.f32.mrb[0].mxu0
  %316 = vmatprep.mubr.bf16.mxu0 0
  %317 = vmatmul.mubr.bf16.gmra.mrb[0].mxu0 %v192
  %v318 = vpop.f32.mrb[0].mxu0
  %v319 = vadd.f32 0.0, %v318
  %v320 = vpop.f32.mrb[0].mxu0
  %v321 = vpop.f32.mrb[0].mxu0
  %v322 = vadd.f32 0.0, %v321
  %v323 = vpop.f32.mrb[0].mxu0
  %324 = vmatprep.mubr.bf16.mxu0 0
  %325 = vmatmul.mubr.bf16.gmra.mrb[0].mxu0 %v193
  %v326 = vpop.f32.mrb[0].mxu0
  %v327 = vadd.f32 0.0, %v326
  %v328 = vpop.f32.mrb[0].mxu0
  %v329 = vpop.f32.mrb[0].mxu0
  %v330 = vadd.f32 0.0, %v329
  %v331 = vpop.f32.mrb[0].mxu0
  %332 = vmatprep.mubr.bf16.mxu0 0
  %333 = vmatmul.mubr.bf16.gmra.mrb[0].mxu0 %v194
  %v334 = vpop.f32.mrb[0].mxu0
  %v335 = vadd.f32 0.0, %v334
  %v336 = vpop.f32.mrb[0].mxu0
  %v337 = vpop.f32.mrb[0].mxu0
  %v338 = vadd.f32 0.0, %v337
  %v339 = vpop.f32.mrb[0].mxu0
  %340 = vmatprep.mubr.bf16.mxu0 0
  %341 = vmatmul.mubr.bf16.gmra.mrb[0].mxu0 %v195
  %v342 = vpop.f32.mrb[0].mxu0
  %v343 = vadd.f32 0.0, %v342
  %v344 = vpop.f32.mrb[0].mxu0
  %v345 = vpop.f32.mrb[0].mxu0
  %v346 = vadd.f32 0.0, %v345
  %v347 = vpop.f32.mrb[0].mxu0
  %348 = vdwg.mxu0
  %v349 = vpack.c.bf16 %v290, %v287
  %v350 = vpack.c.bf16 %v298, %v295
  %v351 = vpack.c.bf16 %v306, %v303
  %v352 = vpack.c.bf16 %v314, %v311
  %v353 = vpack.c.bf16 %v322, %v319
  %v354 = vpack.c.bf16 %v330, %v327
  %v355 = vpack.c.bf16 %v338, %v335
  %v356 = vpack.c.bf16 %v346, %v343
  %v357 = vld [vmem:[%s4] sm:$0xff]
  %v358 = vlaneseq
  %v359 = vshrl.u32 %v358, 7
  %v360 = vsub.s32 0, %v359
  %v361 = vrot.slane %v357, %v360
  %v378 = vunpack.c.l.b16 %v108
  %v379 = vunpack.c.l.b16 %v109
  %v380 = vunpack.c.l.b16 %v110
  %v381 = vunpack.c.l.b16 %v111
  %v382 = vunpack.c.l.b16 %v112
  %v383 = vunpack.c.l.b16 %v113
  %v384 = vunpack.c.l.b16 %v114
  %v385 = vunpack.c.l.b16 %v115
  %v386 = vunpack.c.l.b16 %v116
  %v387 = vunpack.c.l.b16 %v117
  %v388 = vunpack.c.l.b16 %v118
  %v389 = vunpack.c.l.b16 %v119
  %v390 = vunpack.c.l.b16 %v120
  %v391 = vunpack.c.l.b16 %v121
  %v392 = vunpack.c.l.b16 %v122
  %v393 = vunpack.c.l.b16 %v123
  %v394 = vpack.c.b16 %v379, %v378
  %v395 = vpack.c.b16 %v381, %v380
  %v396 = vpack.c.b16 %v383, %v382
  %v397 = vpack.c.b16 %v385, %v384
  %v398 = vpack.c.b16 %v387, %v386
  %v399 = vpack.c.b16 %v389, %v388
  %v400 = vpack.c.b16 %v391, %v390
  %v401 = vpack.c.b16 %v393, %v392
  %410 = vmatprep.subr.bf16.mxu0 0
  %411 = vmatpush1.bf16.msra.mxu0 %v349
  %412 = vmatprep.subr.bf16.mxu0 0
  %413 = vmatpush1.bf16.msra.mxu0 %v350
  %414 = vmatprep.subr.bf16.mxu0 0
  %415 = vmatpush1.bf16.msra.mxu0 %v351
  %416 = vmatprep.subr.bf16.mxu0 0
  %417 = vmatpush1.bf16.msra.mxu0 %v352
  %418 = vmatprep.subr.bf16.mxu0 0
  %419 = vmatpush1.bf16.msra.mxu0 %v353
  %420 = vmatprep.subr.bf16.mxu0 0
  %421 = vmatpush1.bf16.msra.mxu0 %v354
  %422 = vmatprep.subr.bf16.mxu0 0
  %423 = vmatpush1.bf16.msra.mxu0 %v355
  %424 = vmatprep.subr.bf16.mxu0 0
  %425 = vmatpush1.bf16.msra.mxu0 %v356
  %426 = vmatprep.subr.bf16.mxu0 0
  %427 = vmatpush1.bf16.msra.mxu0 0
  %428 = vmatprep.subr.bf16.mxu0 0
  %429 = vmatpush1.bf16.msra.mxu0 0
  %430 = vmatprep.subr.bf16.mxu0 0
  %431 = vmatpush1.bf16.msra.mxu0 0
  %432 = vmatprep.subr.bf16.mxu0 0
  %433 = vmatpush1.bf16.msra.mxu0 0
  %434 = vmatprep.subr.bf16.mxu0 0
  %435 = vmatpush1.bf16.msra.mxu0 0
  %436 = vmatprep.subr.bf16.mxu0 0
  %437 = vmatpush1.bf16.msra.mxu0 0
  %438 = vmatprep.subr.bf16.mxu0 0
  %439 = vmatpush1.bf16.msra.mxu0 0
  %440 = vmatprep.subr.bf16.mxu0 0
  %441 = vmatpush1.bf16.msra.mxu0 0
  %442 = vmatprep.mubr.bf16.mxu0 0
  %443 = vmatmul.mubr.bf16.gmra.mrb[0].mxu0 %v394
  %v444 = vpop.f32.mrb[0].mxu0
  %v445 = vadd.f32 %v361, %v444
  %v446 = vpop.f32.mrb[0].mxu0
  %v447 = vpop.f32.mrb[0].mxu0
  %v448 = vadd.f32 %v361, %v447
  %v449 = vpop.f32.mrb[0].mxu0
  %450 = vmatprep.mubr.bf16.mxu0 0
  %451 = vmatmul.mubr.bf16.gmra.mrb[0].mxu0 %v395
  %v452 = vpop.f32.mrb[0].mxu0
  %v453 = vadd.f32 %v361, %v452
  %v454 = vpop.f32.mrb[0].mxu0
  %v455 = vpop.f32.mrb[0].mxu0
  %v456 = vadd.f32 %v361, %v455
  %v457 = vpop.f32.mrb[0].mxu0
  %458 = vmatprep.mubr.bf16.mxu0 0
  %459 = vmatmul.mubr.bf16.gmra.mrb[0].mxu0 %v396
  %v460 = vpop.f32.mrb[0].mxu0
  %v461 = vadd.f32 %v361, %v460
  %v462 = vpop.f32.mrb[0].mxu0
  %v463 = vpop.f32.mrb[0].mxu0
  %v464 = vadd.f32 %v361, %v463
  %v465 = vpop.f32.mrb[0].mxu0
  %466 = vmatprep.mubr.bf16.mxu0 0
  %467 = vmatmul.mubr.bf16.gmra.mrb[0].mxu0 %v397
  %v468 = vpop.f32.mrb[0].mxu0
  %v469 = vadd.f32 %v361, %v468
  %v470 = vpop.f32.mrb[0].mxu0
  %v471 = vpop.f32.mrb[0].mxu0
  %v472 = vadd.f32 %v361, %v471
  %v473 = vpop.f32.mrb[0].mxu0
  %474 = vmatprep.mubr.bf16.mxu0 0
  %475 = vmatmul.mubr.bf16.gmra.mrb[0].mxu0 %v398
  %v476 = vpop.f32.mrb[0].mxu0
  %v477 = vadd.f32 %v361, %v476
  %v478 = vpop.f32.mrb[0].mxu0
  %v479 = vpop.f32.mrb[0].mxu0
  %v480 = vadd.f32 %v361, %v479
  %v481 = vpop.f32.mrb[0].mxu0
  %482 = vmatprep.mubr.bf16.mxu0 0
  %483 = vmatmul.mubr.bf16.gmra.mrb[0].mxu0 %v399
  %v484 = vpop.f32.mrb[0].mxu0
  %v485 = vadd.f32 %v361, %v484
  %v486 = vpop.f32.mrb[0].mxu0
  %v487 = vpop.f32.mrb[0].mxu0
  %v488 = vadd.f32 %v361, %v487
  %v489 = vpop.f32.mrb[0].mxu0
  %490 = vmatprep.mubr.bf16.mxu0 0
  %491 = vmatmul.mubr.bf16.gmra.mrb[0].mxu0 %v400
  %v492 = vpop.f32.mrb[0].mxu0
  %v493 = vadd.f32 %v361, %v492
  %v494 = vpop.f32.mrb[0].mxu0
  %v495 = vpop.f32.mrb[0].mxu0
  %v496 = vadd.f32 %v361, %v495
  %v497 = vpop.f32.mrb[0].mxu0
  %498 = vmatprep.mubr.bf16.mxu0 0
  %499 = vmatmul.mubr.bf16.gmra.mrb[0].mxu0 %v401
  %v500 = vpop.f32.mrb[0].mxu0
  %v501 = vadd.f32 %v361, %v500
  %v502 = vpop.f32.mrb[0].mxu0
  %v503 = vpop.f32.mrb[0].mxu0
  %v504 = vadd.f32 %v361, %v503
  %v505 = vpop.f32.mrb[0].mxu0
  %506 = vdwg.mxu0
  %v507 = vmax.f32 %v445, 0.0
  %v508 = vmax.f32 %v448, 0.0
  %v509 = vmax.f32 %v453, 0.0
  %v510 = vmax.f32 %v456, 0.0
  %v511 = vmax.f32 %v461, 0.0
  %v512 = vmax.f32 %v464, 0.0
  %v513 = vmax.f32 %v469, 0.0
  %v514 = vmax.f32 %v472, 0.0
  %v515 = vmax.f32 %v477, 0.0
  %v516 = vmax.f32 %v480, 0.0
  %v517 = vmax.f32 %v485, 0.0
  %v518 = vmax.f32 %v488, 0.0
  %v519 = vmax.f32 %v493, 0.0
  %v520 = vmax.f32 %v496, 0.0
  %v521 = vmax.f32 %v501, 0.0
  %v522 = vmax.f32 %v504, 0.0
  %v523 = vlaneseq
  %v524 = vshrl.u32 %v523, 7
  %v525 = vsub.s32 1, %v524
  %v526 = vrot.slane %v357, %v525
  %v527 = vmul.f32 %v507, %v526
  %v528 = vmul.f32 %v508, %v526
  %v529 = vmul.f32 %v509, %v526
  %v530 = vmul.f32 %v510, %v526
  %v531 = vmul.f32 %v511, %v526
  %v532 = vmul.f32 %v512, %v526
  %v533 = vmul.f32 %v513, %v526
  %v534 = vmul.f32 %v514, %v526
  %v535 = vmul.f32 %v515, %v526
  %v536 = vmul.f32 %v516, %v526
  %v537 = vmul.f32 %v517, %v526
  %v538 = vmul.f32 %v518, %v526
  %v539 = vmul.f32 %v519, %v526
  %v540 = vmul.f32 %v520, %v526
  %v541 = vmul.f32 %v521, %v526
  %v542 = vmul.f32 %v522, %v526
  %v543 = vlaneseq
  %v544 = vshrl.u32 %v543, 7
  %v545 = vsub.s32 2, %v544
  %v546 = vrot.slane %v357, %v545
  %v547 = vadd.f32 %v527, %v546
  %v548 = vadd.f32 %v528, %v546
  %v549 = vadd.f32 %v529, %v546
  %v550 = vadd.f32 %v530, %v546
  %v551 = vadd.f32 %v531, %v546
  %v552 = vadd.f32 %v532, %v546
  %v553 = vadd.f32 %v533, %v546
  %v554 = vadd.f32 %v534, %v546
  %v555 = vadd.f32 %v535, %v546
  %v556 = vadd.f32 %v536, %v546
  %v557 = vadd.f32 %v537, %v546
  %v558 = vadd.f32 %v538, %v546
  %v559 = vadd.f32 %v539, %v546
  %v560 = vadd.f32 %v540, %v546
  %v561 = vadd.f32 %v541, %v546
  %v562 = vadd.f32 %v542, %v546
  %v563 = vmul.f32 %v547, %v92
  %v564 = vmul.f32 %v548, %v93
  %v565 = vmul.f32 %v549, %v94
  %v566 = vmul.f32 %v550, %v95
  %v567 = vmul.f32 %v551, %v96
  %v568 = vmul.f32 %v552, %v97
  %v569 = vmul.f32 %v553, %v98
  %v570 = vmul.f32 %v554, %v99
  %v571 = vmul.f32 %v555, %v100
  %v572 = vmul.f32 %v556, %v101
  %v573 = vmul.f32 %v557, %v102
  %v574 = vmul.f32 %v558, %v103
  %v575 = vmul.f32 %v559, %v104
  %v576 = vmul.f32 %v560, %v105
  %v577 = vmul.f32 %v561, %v106
  %v578 = vmul.f32 %v562, %v107
  %v579 = vpack.c.bf16 %v564, %v563
  %v580 = vpack.c.bf16 %v566, %v565
  %v581 = vpack.c.bf16 %v568, %v567
  %v582 = vpack.c.bf16 %v570, %v569
  %v583 = vpack.c.bf16 %v572, %v571
  %v584 = vpack.c.bf16 %v574, %v573
  %v585 = vpack.c.bf16 %v576, %v575
  %v586 = vpack.c.bf16 %v578, %v577
  %s587 = scalar_lea.vmem %s3, 64
  %v588 = vld [vmem:[%s587] sm:$0xf]
  %v589 = vld [vmem:[%s587 + $0x4] sm:$0xf]
  %v590 = vld [vmem:[%s587 + $0x8] sm:$0xf]
  %v591 = vld [vmem:[%s587 + $0xc] sm:$0xf]
  %v592 = vld [vmem:[%s587 + $0x10] sm:$0xf]
  %v593 = vld [vmem:[%s587 + $0x14] sm:$0xf]
  %v594 = vld [vmem:[%s587 + $0x18] sm:$0xf]
  %v595 = vld [vmem:[%s587 + $0x1c] sm:$0xf]
  %v596 = vld [vmem:[%s587 + $0x20] sm:$0xf]
  %v597 = vld [vmem:[%s587 + $0x24] sm:$0xf]
  %v598 = vld [vmem:[%s587 + $0x28] sm:$0xf]
  %v599 = vld [vmem:[%s587 + $0x2c] sm:$0xf]
  %v600 = vld [vmem:[%s587 + $0x30] sm:$0xf]
  %v601 = vld [vmem:[%s587 + $0x34] sm:$0xf]
  %v602 = vld [vmem:[%s587 + $0x38] sm:$0xf]
  %v603 = vld [vmem:[%s587 + $0x3c] sm:$0xf]
  %v620 = vunpack.c.l.b16 %v588
  %v621 = vunpack.c.l.b16 %v589
  %v622 = vunpack.c.l.b16 %v590
  %v623 = vunpack.c.l.b16 %v591
  %v624 = vunpack.c.l.b16 %v592
  %v625 = vunpack.c.l.b16 %v593
  %v626 = vunpack.c.l.b16 %v594
  %v627 = vunpack.c.l.b16 %v595
  %v628 = vunpack.c.l.b16 %v596
  %v629 = vunpack.c.l.b16 %v597
  %v630 = vunpack.c.l.b16 %v598
  %v631 = vunpack.c.l.b16 %v599
  %v632 = vunpack.c.l.b16 %v600
  %v633 = vunpack.c.l.b16 %v601
  %v634 = vunpack.c.l.b16 %v602
  %v635 = vunpack.c.l.b16 %v603
  %v636 = vpack.c.b16 %v621, %v620
  %v637 = vpack.c.b16 %v623, %v622
  %v638 = vpack.c.b16 %v625, %v624
  %v639 = vpack.c.b16 %v627, %v626
  %v640 = vpack.c.b16 %v629, %v628
  %v641 = vpack.c.b16 %v631, %v630
  %v642 = vpack.c.b16 %v633, %v632
  %v643 = vpack.c.b16 %v635, %v634
  %652 = vmatprep.subr.bf16.mxu0 0
  %653 = vmatpush1.bf16.msra.mxu0 %v636
  %654 = vmatprep.subr.bf16.mxu0 0
  %655 = vmatpush1.bf16.msra.mxu0 %v637
  %656 = vmatprep.subr.bf16.mxu0 0
  %657 = vmatpush1.bf16.msra.mxu0 %v638
  %658 = vmatprep.subr.bf16.mxu0 0
  %659 = vmatpush1.bf16.msra.mxu0 %v639
  %660 = vmatprep.subr.bf16.mxu0 0
  %661 = vmatpush1.bf16.msra.mxu0 %v640
  %662 = vmatprep.subr.bf16.mxu0 0
  %663 = vmatpush1.bf16.msra.mxu0 %v641
  %664 = vmatprep.subr.bf16.mxu0 0
  %665 = vmatpush1.bf16.msra.mxu0 %v642
  %666 = vmatprep.subr.bf16.mxu0 0
  %667 = vmatpush1.bf16.msra.mxu0 %v643
  %668 = vmatprep.subr.bf16.mxu0 0
  %669 = vmatpush1.bf16.msra.mxu0 0
  %670 = vmatprep.subr.bf16.mxu0 0
  %671 = vmatpush1.bf16.msra.mxu0 0
  %672 = vmatprep.subr.bf16.mxu0 0
  %673 = vmatpush1.bf16.msra.mxu0 0
  %674 = vmatprep.subr.bf16.mxu0 0
  %675 = vmatpush1.bf16.msra.mxu0 0
  %676 = vmatprep.subr.bf16.mxu0 0
  %677 = vmatpush1.bf16.msra.mxu0 0
  %678 = vmatprep.subr.bf16.mxu0 0
  %679 = vmatpush1.bf16.msra.mxu0 0
  %680 = vmatprep.subr.bf16.mxu0 0
  %681 = vmatpush1.bf16.msra.mxu0 0
  %682 = vmatprep.subr.bf16.mxu0 0
  %683 = vmatpush1.bf16.msra.mxu0 0
  %684 = vmatprep.mubr.bf16.mxu0 0
  %685 = vmatmul.mubr.bf16.gmra.mrb[0].mxu0 %v579
  %v686 = vpop.f32.mrb[0].mxu0
  %v687 = vadd.f32 0.0, %v686
  %v688 = vpop.f32.mrb[0].mxu0
  %v689 = vpop.f32.mrb[0].mxu0
  %v690 = vadd.f32 0.0, %v689
  %v691 = vpop.f32.mrb[0].mxu0
  %692 = vmatprep.mubr.bf16.mxu0 0
  %693 = vmatmul.mubr.bf16.gmra.mrb[0].mxu0 %v580
  %v694 = vpop.f32.mrb[0].mxu0
  %v695 = vadd.f32 0.0, %v694
  %v696 = vpop.f32.mrb[0].mxu0
  %v697 = vpop.f32.mrb[0].mxu0
  %v698 = vadd.f32 0.0, %v697
  %v699 = vpop.f32.mrb[0].mxu0
  %700 = vmatprep.mubr.bf16.mxu0 0
  %701 = vmatmul.mubr.bf16.gmra.mrb[0].mxu0 %v581
  %v702 = vpop.f32.mrb[0].mxu0
  %v703 = vadd.f32 0.0, %v702
  %v704 = vpop.f32.mrb[0].mxu0
  %v705 = vpop.f32.mrb[0].mxu0
  %v706 = vadd.f32 0.0, %v705
  %v707 = vpop.f32.mrb[0].mxu0
  %708 = vmatprep.mubr.bf16.mxu0 0
  %709 = vmatmul.mubr.bf16.gmra.mrb[0].mxu0 %v582
  %v710 = vpop.f32.mrb[0].mxu0
  %v711 = vadd.f32 0.0, %v710
  %v712 = vpop.f32.mrb[0].mxu0
  %v713 = vpop.f32.mrb[0].mxu0
  %v714 = vadd.f32 0.0, %v713
  %v715 = vpop.f32.mrb[0].mxu0
  %716 = vmatprep.mubr.bf16.mxu0 0
  %717 = vmatmul.mubr.bf16.gmra.mrb[0].mxu0 %v583
  %v718 = vpop.f32.mrb[0].mxu0
  %v719 = vadd.f32 0.0, %v718
  %v720 = vpop.f32.mrb[0].mxu0
  %v721 = vpop.f32.mrb[0].mxu0
  %v722 = vadd.f32 0.0, %v721
  %v723 = vpop.f32.mrb[0].mxu0
  %724 = vmatprep.mubr.bf16.mxu0 0
  %725 = vmatmul.mubr.bf16.gmra.mrb[0].mxu0 %v584
  %v726 = vpop.f32.mrb[0].mxu0
  %v727 = vadd.f32 0.0, %v726
  %v728 = vpop.f32.mrb[0].mxu0
  %v729 = vpop.f32.mrb[0].mxu0
  %v730 = vadd.f32 0.0, %v729
  %v731 = vpop.f32.mrb[0].mxu0
  %732 = vmatprep.mubr.bf16.mxu0 0
  %733 = vmatmul.mubr.bf16.gmra.mrb[0].mxu0 %v585
  %v734 = vpop.f32.mrb[0].mxu0
  %v735 = vadd.f32 0.0, %v734
  %v736 = vpop.f32.mrb[0].mxu0
  %v737 = vpop.f32.mrb[0].mxu0
  %v738 = vadd.f32 0.0, %v737
  %v739 = vpop.f32.mrb[0].mxu0
  %740 = vmatprep.mubr.bf16.mxu0 0
  %741 = vmatmul.mubr.bf16.gmra.mrb[0].mxu0 %v586
  %v742 = vpop.f32.mrb[0].mxu0
  %v743 = vadd.f32 0.0, %v742
  %v744 = vpop.f32.mrb[0].mxu0
  %v745 = vpop.f32.mrb[0].mxu0
  %v746 = vadd.f32 0.0, %v745
  %v747 = vpop.f32.mrb[0].mxu0
  %748 = vdwg.mxu0
  %v749 = vpack.c.bf16 %v690, %v687
  %v750 = vpack.c.bf16 %v698, %v695
  %v751 = vpack.c.bf16 %v706, %v703
  %v752 = vpack.c.bf16 %v714, %v711
  %v753 = vpack.c.bf16 %v722, %v719
  %v754 = vpack.c.bf16 %v730, %v727
  %v755 = vpack.c.bf16 %v738, %v735
  %v756 = vpack.c.bf16 %v746, %v743
  %s757 = scalar_lea.vmem %s4, 8
  %v758 = vld [vmem:[%s757] sm:$0xff]
  %v759 = vlaneseq
  %v760 = vshrl.u32 %v759, 7
  %v761 = vsub.s32 0, %v760
  %v762 = vrot.slane %v758, %v761
  %763 = vmatprep.subr.bf16.mxu0 0
  %764 = vmatpush1.bf16.msra.mxu0 %v749
  %765 = vmatprep.subr.bf16.mxu0 0
  %766 = vmatpush1.bf16.msra.mxu0 %v750
  %767 = vmatprep.subr.bf16.mxu0 0
  %768 = vmatpush1.bf16.msra.mxu0 %v751
  %769 = vmatprep.subr.bf16.mxu0 0
  %770 = vmatpush1.bf16.msra.mxu0 %v752
  %771 = vmatprep.subr.bf16.mxu0 0
  %772 = vmatpush1.bf16.msra.mxu0 %v753
  %773 = vmatprep.subr.bf16.mxu0 0
  %774 = vmatpush1.bf16.msra.mxu0 %v754
  %775 = vmatprep.subr.bf16.mxu0 0
  %776 = vmatpush1.bf16.msra.mxu0 %v755
  %777 = vmatprep.subr.bf16.mxu0 0
  %778 = vmatpush1.bf16.msra.mxu0 %v756
  %779 = vmatprep.subr.bf16.mxu0 0
  %780 = vmatpush1.bf16.msra.mxu0 0
  %781 = vmatprep.subr.bf16.mxu0 0
  %782 = vmatpush1.bf16.msra.mxu0 0
  %783 = vmatprep.subr.bf16.mxu0 0
  %784 = vmatpush1.bf16.msra.mxu0 0
  %785 = vmatprep.subr.bf16.mxu0 0
  %786 = vmatpush1.bf16.msra.mxu0 0
  %787 = vmatprep.subr.bf16.mxu0 0
  %788 = vmatpush1.bf16.msra.mxu0 0
  %789 = vmatprep.subr.bf16.mxu0 0
  %790 = vmatpush1.bf16.msra.mxu0 0
  %791 = vmatprep.subr.bf16.mxu0 0
  %792 = vmatpush1.bf16.msra.mxu0 0
  %793 = vmatprep.subr.bf16.mxu0 0
  %794 = vmatpush1.bf16.msra.mxu0 0
  %795 = vmatprep.mubr.bf16.mxu0 0
  %796 = vmatmul.mubr.bf16.gmra.mrb[0].mxu0 %v394
  %v797 = vpop.f32.mrb[0].mxu0
  %v798 = vadd.f32 %v762, %v797
  %v799 = vpop.f32.mrb[0].mxu0
  %v800 = vpop.f32.mrb[0].mxu0
  %v801 = vadd.f32 %v762, %v800
  %v802 = vpop.f32.mrb[0].mxu0
  %803 = vmatprep.mubr.bf16.mxu0 0
  %804 = vmatmul.mubr.bf16.gmra.mrb[0].mxu0 %v395
  %v805 = vpop.f32.mrb[0].mxu0
  %v806 = vadd.f32 %v762, %v805
  %v807 = vpop.f32.mrb[0].mxu0
  %v808 = vpop.f32.mrb[0].mxu0
  %v809 = vadd.f32 %v762, %v808
  %v810 = vpop.f32.mrb[0].mxu0
  %811 = vmatprep.mubr.bf16.mxu0 0
  %812 = vmatmul.mubr.bf16.gmra.mrb[0].mxu0 %v396
  %v813 = vpop.f32.mrb[0].mxu0
  %v814 = vadd.f32 %v762, %v813
  %v815 = vpop.f32.mrb[0].mxu0
  %v816 = vpop.f32.mrb[0].mxu0
  %v817 = vadd.f32 %v762, %v816
  %v818 = vpop.f32.mrb[0].mxu0
  %819 = vmatprep.mubr.bf16.mxu0 0
  %820 = vmatmul.mubr.bf16.gmra.mrb[0].mxu0 %v397
  %v821 = vpop.f32.mrb[0].mxu0
  %v822 = vadd.f32 %v762, %v821
  %v823 = vpop.f32.mrb[0].mxu0
  %v824 = vpop.f32.mrb[0].mxu0
  %v825 = vadd.f32 %v762, %v824
  %v826 = vpop.f32.mrb[0].mxu0
  %827 = vmatprep.mubr.bf16.mxu0 0
  %828 = vmatmul.mubr.bf16.gmra.mrb[0].mxu0 %v398
  %v829 = vpop.f32.mrb[0].mxu0
  %v830 = vadd.f32 %v762, %v829
  %v831 = vpop.f32.mrb[0].mxu0
  %v832 = vpop.f32.mrb[0].mxu0
  %v833 = vadd.f32 %v762, %v832
  %v834 = vpop.f32.mrb[0].mxu0
  %835 = vmatprep.mubr.bf16.mxu0 0
  %836 = vmatmul.mubr.bf16.gmra.mrb[0].mxu0 %v399
  %v837 = vpop.f32.mrb[0].mxu0
  %v838 = vadd.f32 %v762, %v837
  %v839 = vpop.f32.mrb[0].mxu0
  %v840 = vpop.f32.mrb[0].mxu0
  %v841 = vadd.f32 %v762, %v840
  %v842 = vpop.f32.mrb[0].mxu0
  %843 = vmatprep.mubr.bf16.mxu0 0
  %844 = vmatmul.mubr.bf16.gmra.mrb[0].mxu0 %v400
  %v845 = vpop.f32.mrb[0].mxu0
  %v846 = vadd.f32 %v762, %v845
  %v847 = vpop.f32.mrb[0].mxu0
  %v848 = vpop.f32.mrb[0].mxu0
  %v849 = vadd.f32 %v762, %v848
  %v850 = vpop.f32.mrb[0].mxu0
  %851 = vmatprep.mubr.bf16.mxu0 0
  %852 = vmatmul.mubr.bf16.gmra.mrb[0].mxu0 %v401
  %v853 = vpop.f32.mrb[0].mxu0
  %v854 = vadd.f32 %v762, %v853
  %v855 = vpop.f32.mrb[0].mxu0
  %v856 = vpop.f32.mrb[0].mxu0
  %v857 = vadd.f32 %v762, %v856
  %v858 = vpop.f32.mrb[0].mxu0
  %859 = vdwg.mxu0
  %v860 = vmax.f32 %v798, 0.0
  %v861 = vmax.f32 %v801, 0.0
  %v862 = vmax.f32 %v806, 0.0
  %v863 = vmax.f32 %v809, 0.0
  %v864 = vmax.f32 %v814, 0.0
  %v865 = vmax.f32 %v817, 0.0
  %v866 = vmax.f32 %v822, 0.0
  %v867 = vmax.f32 %v825, 0.0
  %v868 = vmax.f32 %v830, 0.0
  %v869 = vmax.f32 %v833, 0.0
  %v870 = vmax.f32 %v838, 0.0
  %v871 = vmax.f32 %v841, 0.0
  %v872 = vmax.f32 %v846, 0.0
  %v873 = vmax.f32 %v849, 0.0
  %v874 = vmax.f32 %v854, 0.0
  %v875 = vmax.f32 %v857, 0.0
  %v876 = vlaneseq
  %v877 = vshrl.u32 %v876, 7
  %v878 = vsub.s32 1, %v877
  %v879 = vrot.slane %v758, %v878
  %v880 = vmul.f32 %v860, %v879
  %v881 = vmul.f32 %v861, %v879
  %v882 = vmul.f32 %v862, %v879
  %v883 = vmul.f32 %v863, %v879
  %v884 = vmul.f32 %v864, %v879
  %v885 = vmul.f32 %v865, %v879
  %v886 = vmul.f32 %v866, %v879
  %v887 = vmul.f32 %v867, %v879
  %v888 = vmul.f32 %v868, %v879
  %v889 = vmul.f32 %v869, %v879
  %v890 = vmul.f32 %v870, %v879
  %v891 = vmul.f32 %v871, %v879
  %v892 = vmul.f32 %v872, %v879
  %v893 = vmul.f32 %v873, %v879
  %v894 = vmul.f32 %v874, %v879
  %v895 = vmul.f32 %v875, %v879
  %v896 = vlaneseq
  %v897 = vshrl.u32 %v896, 7
  %v898 = vsub.s32 2, %v897
  %v899 = vrot.slane %v758, %v898
  %v900 = vadd.f32 %v880, %v899
  %v901 = vadd.f32 %v881, %v899
  %v902 = vadd.f32 %v882, %v899
  %v903 = vadd.f32 %v883, %v899
  %v904 = vadd.f32 %v884, %v899
  %v905 = vadd.f32 %v885, %v899
  %v906 = vadd.f32 %v886, %v899
  %v907 = vadd.f32 %v887, %v899
  %v908 = vadd.f32 %v888, %v899
  %v909 = vadd.f32 %v889, %v899
  %v910 = vadd.f32 %v890, %v899
  %v911 = vadd.f32 %v891, %v899
  %v912 = vadd.f32 %v892, %v899
  %v913 = vadd.f32 %v893, %v899
  %v914 = vadd.f32 %v894, %v899
  %v915 = vadd.f32 %v895, %v899
  %v916 = vmul.f32 %v900, %v92
  %v917 = vmul.f32 %v901, %v93
  %v918 = vmul.f32 %v902, %v94
  %v919 = vmul.f32 %v903, %v95
  %v920 = vmul.f32 %v904, %v96
  %v921 = vmul.f32 %v905, %v97
  %v922 = vmul.f32 %v906, %v98
  %v923 = vmul.f32 %v907, %v99
  %v924 = vmul.f32 %v908, %v100
  %v925 = vmul.f32 %v909, %v101
  %v926 = vmul.f32 %v910, %v102
  %v927 = vmul.f32 %v911, %v103
  %v928 = vmul.f32 %v912, %v104
  %v929 = vmul.f32 %v913, %v105
  %v930 = vmul.f32 %v914, %v106
  %v931 = vmul.f32 %v915, %v107
  %v932 = vpack.c.bf16 %v917, %v916
  %v933 = vpack.c.bf16 %v919, %v918
  %v934 = vpack.c.bf16 %v921, %v920
  %v935 = vpack.c.bf16 %v923, %v922
  %v936 = vpack.c.bf16 %v925, %v924
  %v937 = vpack.c.bf16 %v927, %v926
  %v938 = vpack.c.bf16 %v929, %v928
  %v939 = vpack.c.bf16 %v931, %v930
  %s940 = scalar_lea.vmem %s3, 128
  %v941 = vld [vmem:[%s940] sm:$0xf]
  %v942 = vld [vmem:[%s940 + $0x4] sm:$0xf]
  %v943 = vld [vmem:[%s940 + $0x8] sm:$0xf]
  %v944 = vld [vmem:[%s940 + $0xc] sm:$0xf]
  %v945 = vld [vmem:[%s940 + $0x10] sm:$0xf]
  %v946 = vld [vmem:[%s940 + $0x14] sm:$0xf]
  %v947 = vld [vmem:[%s940 + $0x18] sm:$0xf]
  %v948 = vld [vmem:[%s940 + $0x1c] sm:$0xf]
  %v949 = vld [vmem:[%s940 + $0x20] sm:$0xf]
  %v950 = vld [vmem:[%s940 + $0x24] sm:$0xf]
  %v951 = vld [vmem:[%s940 + $0x28] sm:$0xf]
  %v952 = vld [vmem:[%s940 + $0x2c] sm:$0xf]
  %v953 = vld [vmem:[%s940 + $0x30] sm:$0xf]
  %v954 = vld [vmem:[%s940 + $0x34] sm:$0xf]
  %v955 = vld [vmem:[%s940 + $0x38] sm:$0xf]
  %v956 = vld [vmem:[%s940 + $0x3c] sm:$0xf]
  %v973 = vunpack.c.l.b16 %v941
  %v974 = vunpack.c.l.b16 %v942
  %v975 = vunpack.c.l.b16 %v943
  %v976 = vunpack.c.l.b16 %v944
  %v977 = vunpack.c.l.b16 %v945
  %v978 = vunpack.c.l.b16 %v946
  %v979 = vunpack.c.l.b16 %v947
  %v980 = vunpack.c.l.b16 %v948
  %v981 = vunpack.c.l.b16 %v949
  %v982 = vunpack.c.l.b16 %v950
  %v983 = vunpack.c.l.b16 %v951
  %v984 = vunpack.c.l.b16 %v952
  %v985 = vunpack.c.l.b16 %v953
  %v986 = vunpack.c.l.b16 %v954
  %v987 = vunpack.c.l.b16 %v955
  %v988 = vunpack.c.l.b16 %v956
  %v989 = vpack.c.b16 %v974, %v973
  %v990 = vpack.c.b16 %v976, %v975
  %v991 = vpack.c.b16 %v978, %v977
  %v992 = vpack.c.b16 %v980, %v979
  %v993 = vpack.c.b16 %v982, %v981
  %v994 = vpack.c.b16 %v984, %v983
  %v995 = vpack.c.b16 %v986, %v985
  %v996 = vpack.c.b16 %v988, %v987
  %1005 = vmatprep.subr.bf16.mxu0 0
  %1006 = vmatpush1.bf16.msra.mxu0 %v989
  %1007 = vmatprep.subr.bf16.mxu0 0
  %1008 = vmatpush1.bf16.msra.mxu0 %v990
  %1009 = vmatprep.subr.bf16.mxu0 0
  %1010 = vmatpush1.bf16.msra.mxu0 %v991
  %1011 = vmatprep.subr.bf16.mxu0 0
  %1012 = vmatpush1.bf16.msra.mxu0 %v992
  %1013 = vmatprep.subr.bf16.mxu0 0
  %1014 = vmatpush1.bf16.msra.mxu0 %v993
  %1015 = vmatprep.subr.bf16.mxu0 0
  %1016 = vmatpush1.bf16.msra.mxu0 %v994
  %1017 = vmatprep.subr.bf16.mxu0 0
  %1018 = vmatpush1.bf16.msra.mxu0 %v995
  %1019 = vmatprep.subr.bf16.mxu0 0
  %1020 = vmatpush1.bf16.msra.mxu0 %v996
  %1021 = vmatprep.subr.bf16.mxu0 0
  %1022 = vmatpush1.bf16.msra.mxu0 0
  %1023 = vmatprep.subr.bf16.mxu0 0
  %1024 = vmatpush1.bf16.msra.mxu0 0
  %1025 = vmatprep.subr.bf16.mxu0 0
  %1026 = vmatpush1.bf16.msra.mxu0 0
  %1027 = vmatprep.subr.bf16.mxu0 0
  %1028 = vmatpush1.bf16.msra.mxu0 0
  %1029 = vmatprep.subr.bf16.mxu0 0
  %1030 = vmatpush1.bf16.msra.mxu0 0
  %1031 = vmatprep.subr.bf16.mxu0 0
  %1032 = vmatpush1.bf16.msra.mxu0 0
  %1033 = vmatprep.subr.bf16.mxu0 0
  %1034 = vmatpush1.bf16.msra.mxu0 0
  %1035 = vmatprep.subr.bf16.mxu0 0
  %1036 = vmatpush1.bf16.msra.mxu0 0
  %1037 = vmatprep.mubr.bf16.mxu0 0
  %1038 = vmatmul.mubr.bf16.gmra.mrb[0].mxu0 %v932
  %v1039 = vpop.f32.mrb[0].mxu0
  %v1040 = vadd.f32 0.0, %v1039
  %v1041 = vpop.f32.mrb[0].mxu0
  %v1042 = vpop.f32.mrb[0].mxu0
  %v1043 = vadd.f32 0.0, %v1042
  %v1044 = vpop.f32.mrb[0].mxu0
  %1045 = vmatprep.mubr.bf16.mxu0 0
  %1046 = vmatmul.mubr.bf16.gmra.mrb[0].mxu0 %v933
  %v1047 = vpop.f32.mrb[0].mxu0
  %v1048 = vadd.f32 0.0, %v1047
  %v1049 = vpop.f32.mrb[0].mxu0
  %v1050 = vpop.f32.mrb[0].mxu0
  %v1051 = vadd.f32 0.0, %v1050
  %v1052 = vpop.f32.mrb[0].mxu0
  %1053 = vmatprep.mubr.bf16.mxu0 0
  %1054 = vmatmul.mubr.bf16.gmra.mrb[0].mxu0 %v934
  %v1055 = vpop.f32.mrb[0].mxu0
  %v1056 = vadd.f32 0.0, %v1055
  %v1057 = vpop.f32.mrb[0].mxu0
  %v1058 = vpop.f32.mrb[0].mxu0
  %v1059 = vadd.f32 0.0, %v1058
  %v1060 = vpop.f32.mrb[0].mxu0
  %1061 = vmatprep.mubr.bf16.mxu0 0
  %1062 = vmatmul.mubr.bf16.gmra.mrb[0].mxu0 %v935
  %v1063 = vpop.f32.mrb[0].mxu0
  %v1064 = vadd.f32 0.0, %v1063
  %v1065 = vpop.f32.mrb[0].mxu0
  %v1066 = vpop.f32.mrb[0].mxu0
  %v1067 = vadd.f32 0.0, %v1066
  %v1068 = vpop.f32.mrb[0].mxu0
  %1069 = vmatprep.mubr.bf16.mxu0 0
  %1070 = vmatmul.mubr.bf16.gmra.mrb[0].mxu0 %v936
  %v1071 = vpop.f32.mrb[0].mxu0
  %v1072 = vadd.f32 0.0, %v1071
  %v1073 = vpop.f32.mrb[0].mxu0
  %v1074 = vpop.f32.mrb[0].mxu0
  %v1075 = vadd.f32 0.0, %v1074
  %v1076 = vpop.f32.mrb[0].mxu0
  %1077 = vmatprep.mubr.bf16.mxu0 0
  %1078 = vmatmul.mubr.bf16.gmra.mrb[0].mxu0 %v937
  %v1079 = vpop.f32.mrb[0].mxu0
  %v1080 = vadd.f32 0.0, %v1079
  %v1081 = vpop.f32.mrb[0].mxu0
  %v1082 = vpop.f32.mrb[0].mxu0
  %v1083 = vadd.f32 0.0, %v1082
  %v1084 = vpop.f32.mrb[0].mxu0
  %1085 = vmatprep.mubr.bf16.mxu0 0
  %1086 = vmatmul.mubr.bf16.gmra.mrb[0].mxu0 %v938
  %v1087 = vpop.f32.mrb[0].mxu0
  %v1088 = vadd.f32 0.0, %v1087
  %v1089 = vpop.f32.mrb[0].mxu0
  %v1090 = vpop.f32.mrb[0].mxu0
  %v1091 = vadd.f32 0.0, %v1090
  %v1092 = vpop.f32.mrb[0].mxu0
  %1093 = vmatprep.mubr.bf16.mxu0 0
  %1094 = vmatmul.mubr.bf16.gmra.mrb[0].mxu0 %v939
  %v1095 = vpop.f32.mrb[0].mxu0
  %v1096 = vadd.f32 0.0, %v1095
  %v1097 = vpop.f32.mrb[0].mxu0
  %v1098 = vpop.f32.mrb[0].mxu0
  %v1099 = vadd.f32 0.0, %v1098
  %v1100 = vpop.f32.mrb[0].mxu0
  %1101 = vdwg.mxu0
  %v1102 = vpack.c.bf16 %v1043, %v1040
  %v1103 = vpack.c.bf16 %v1051, %v1048
  %v1104 = vpack.c.bf16 %v1059, %v1056
  %v1105 = vpack.c.bf16 %v1067, %v1064
  %v1106 = vpack.c.bf16 %v1075, %v1072
  %v1107 = vpack.c.bf16 %v1083, %v1080
  %v1108 = vpack.c.bf16 %v1091, %v1088
  %v1109 = vpack.c.bf16 %v1099, %v1096
  %s1110 = scalar_lea.vmem %s4, 16
  %v1111 = vld [vmem:[%s1110] sm:$0xff]
  %v1112 = vlaneseq
  %v1113 = vshrl.u32 %v1112, 7
  %v1114 = vsub.s32 0, %v1113
  %v1115 = vrot.slane %v1111, %v1114
  %1116 = vmatprep.subr.bf16.mxu0 0
  %1117 = vmatpush1.bf16.msra.mxu0 %v1102
  %1118 = vmatprep.subr.bf16.mxu0 0
  %1119 = vmatpush1.bf16.msra.mxu0 %v1103
  %1120 = vmatprep.subr.bf16.mxu0 0
  %1121 = vmatpush1.bf16.msra.mxu0 %v1104
  %1122 = vmatprep.subr.bf16.mxu0 0
  %1123 = vmatpush1.bf16.msra.mxu0 %v1105
  %1124 = vmatprep.subr.bf16.mxu0 0
  %1125 = vmatpush1.bf16.msra.mxu0 %v1106
  %1126 = vmatprep.subr.bf16.mxu0 0
  %1127 = vmatpush1.bf16.msra.mxu0 %v1107
  %1128 = vmatprep.subr.bf16.mxu0 0
  %1129 = vmatpush1.bf16.msra.mxu0 %v1108
  %1130 = vmatprep.subr.bf16.mxu0 0
  %1131 = vmatpush1.bf16.msra.mxu0 %v1109
  %1132 = vmatprep.subr.bf16.mxu0 0
  %1133 = vmatpush1.bf16.msra.mxu0 0
  %1134 = vmatprep.subr.bf16.mxu0 0
  %1135 = vmatpush1.bf16.msra.mxu0 0
  %1136 = vmatprep.subr.bf16.mxu0 0
  %1137 = vmatpush1.bf16.msra.mxu0 0
  %1138 = vmatprep.subr.bf16.mxu0 0
  %1139 = vmatpush1.bf16.msra.mxu0 0
  %1140 = vmatprep.subr.bf16.mxu0 0
  %1141 = vmatpush1.bf16.msra.mxu0 0
  %1142 = vmatprep.subr.bf16.mxu0 0
  %1143 = vmatpush1.bf16.msra.mxu0 0
  %1144 = vmatprep.subr.bf16.mxu0 0
  %1145 = vmatpush1.bf16.msra.mxu0 0
  %1146 = vmatprep.subr.bf16.mxu0 0
  %1147 = vmatpush1.bf16.msra.mxu0 0
  %1148 = vmatprep.mubr.bf16.mxu0 0
  %1149 = vmatmul.mubr.bf16.gmra.mrb[0].mxu0 %v394
  %v1150 = vpop.f32.mrb[0].mxu0
  %v1151 = vadd.f32 %v1115, %v1150
  %v1152 = vpop.f32.mrb[0].mxu0
  %v1153 = vpop.f32.mrb[0].mxu0
  %v1154 = vadd.f32 %v1115, %v1153
  %v1155 = vpop.f32.mrb[0].mxu0
  %1156 = vmatprep.mubr.bf16.mxu0 0
  %1157 = vmatmul.mubr.bf16.gmra.mrb[0].mxu0 %v395
  %v1158 = vpop.f32.mrb[0].mxu0
  %v1159 = vadd.f32 %v1115, %v1158
  %v1160 = vpop.f32.mrb[0].mxu0
  %v1161 = vpop.f32.mrb[0].mxu0
  %v1162 = vadd.f32 %v1115, %v1161
  %v1163 = vpop.f32.mrb[0].mxu0
  %1164 = vmatprep.mubr.bf16.mxu0 0
  %1165 = vmatmul.mubr.bf16.gmra.mrb[0].mxu0 %v396
  %v1166 = vpop.f32.mrb[0].mxu0
  %v1167 = vadd.f32 %v1115, %v1166
  %v1168 = vpop.f32.mrb[0].mxu0
  %v1169 = vpop.f32.mrb[0].mxu0
  %v1170 = vadd.f32 %v1115, %v1169
  %v1171 = vpop.f32.mrb[0].mxu0
  %1172 = vmatprep.mubr.bf16.mxu0 0
  %1173 = vmatmul.mubr.bf16.gmra.mrb[0].mxu0 %v397
  %v1174 = vpop.f32.mrb[0].mxu0
  %v1175 = vadd.f32 %v1115, %v1174
  %v1176 = vpop.f32.mrb[0].mxu0
  %v1177 = vpop.f32.mrb[0].mxu0
  %v1178 = vadd.f32 %v1115, %v1177
  %v1179 = vpop.f32.mrb[0].mxu0
  %1180 = vmatprep.mubr.bf16.mxu0 0
  %1181 = vmatmul.mubr.bf16.gmra.mrb[0].mxu0 %v398
  %v1182 = vpop.f32.mrb[0].mxu0
  %v1183 = vadd.f32 %v1115, %v1182
  %v1184 = vpop.f32.mrb[0].mxu0
  %v1185 = vpop.f32.mrb[0].mxu0
  %v1186 = vadd.f32 %v1115, %v1185
  %v1187 = vpop.f32.mrb[0].mxu0
  %1188 = vmatprep.mubr.bf16.mxu0 0
  %1189 = vmatmul.mubr.bf16.gmra.mrb[0].mxu0 %v399
  %v1190 = vpop.f32.mrb[0].mxu0
  %v1191 = vadd.f32 %v1115, %v1190
  %v1192 = vpop.f32.mrb[0].mxu0
  %v1193 = vpop.f32.mrb[0].mxu0
  %v1194 = vadd.f32 %v1115, %v1193
  %v1195 = vpop.f32.mrb[0].mxu0
  %1196 = vmatprep.mubr.bf16.mxu0 0
  %1197 = vmatmul.mubr.bf16.gmra.mrb[0].mxu0 %v400
  %v1198 = vpop.f32.mrb[0].mxu0
  %v1199 = vadd.f32 %v1115, %v1198
  %v1200 = vpop.f32.mrb[0].mxu0
  %v1201 = vpop.f32.mrb[0].mxu0
  %v1202 = vadd.f32 %v1115, %v1201
  %v1203 = vpop.f32.mrb[0].mxu0
  %1204 = vmatprep.mubr.bf16.mxu0 0
  %1205 = vmatmul.mubr.bf16.gmra.mrb[0].mxu0 %v401
  %v1206 = vpop.f32.mrb[0].mxu0
  %v1207 = vadd.f32 %v1115, %v1206
  %v1208 = vpop.f32.mrb[0].mxu0
  %v1209 = vpop.f32.mrb[0].mxu0
  %v1210 = vadd.f32 %v1115, %v1209
  %v1211 = vpop.f32.mrb[0].mxu0
  %1212 = vdwg.mxu0
  %v1213 = vmax.f32 %v1151, 0.0
  %v1214 = vmax.f32 %v1154, 0.0
  %v1215 = vmax.f32 %v1159, 0.0
  %v1216 = vmax.f32 %v1162, 0.0
  %v1217 = vmax.f32 %v1167, 0.0
  %v1218 = vmax.f32 %v1170, 0.0
  %v1219 = vmax.f32 %v1175, 0.0
  %v1220 = vmax.f32 %v1178, 0.0
  %v1221 = vmax.f32 %v1183, 0.0
  %v1222 = vmax.f32 %v1186, 0.0
  %v1223 = vmax.f32 %v1191, 0.0
  %v1224 = vmax.f32 %v1194, 0.0
  %v1225 = vmax.f32 %v1199, 0.0
  %v1226 = vmax.f32 %v1202, 0.0
  %v1227 = vmax.f32 %v1207, 0.0
  %v1228 = vmax.f32 %v1210, 0.0
  %v1229 = vlaneseq
  %v1230 = vshrl.u32 %v1229, 7
  %v1231 = vsub.s32 1, %v1230
  %v1232 = vrot.slane %v1111, %v1231
  %v1233 = vmul.f32 %v1213, %v1232
  %v1234 = vmul.f32 %v1214, %v1232
  %v1235 = vmul.f32 %v1215, %v1232
  %v1236 = vmul.f32 %v1216, %v1232
  %v1237 = vmul.f32 %v1217, %v1232
  %v1238 = vmul.f32 %v1218, %v1232
  %v1239 = vmul.f32 %v1219, %v1232
  %v1240 = vmul.f32 %v1220, %v1232
  %v1241 = vmul.f32 %v1221, %v1232
  %v1242 = vmul.f32 %v1222, %v1232
  %v1243 = vmul.f32 %v1223, %v1232
  %v1244 = vmul.f32 %v1224, %v1232
  %v1245 = vmul.f32 %v1225, %v1232
  %v1246 = vmul.f32 %v1226, %v1232
  %v1247 = vmul.f32 %v1227, %v1232
  %v1248 = vmul.f32 %v1228, %v1232
  %v1249 = vlaneseq
  %v1250 = vshrl.u32 %v1249, 7
  %v1251 = vsub.s32 2, %v1250
  %v1252 = vrot.slane %v1111, %v1251
  %v1253 = vadd.f32 %v1233, %v1252
  %v1254 = vadd.f32 %v1234, %v1252
  %v1255 = vadd.f32 %v1235, %v1252
  %v1256 = vadd.f32 %v1236, %v1252
  %v1257 = vadd.f32 %v1237, %v1252
  %v1258 = vadd.f32 %v1238, %v1252
  %v1259 = vadd.f32 %v1239, %v1252
  %v1260 = vadd.f32 %v1240, %v1252
  %v1261 = vadd.f32 %v1241, %v1252
  %v1262 = vadd.f32 %v1242, %v1252
  %v1263 = vadd.f32 %v1243, %v1252
  %v1264 = vadd.f32 %v1244, %v1252
  %v1265 = vadd.f32 %v1245, %v1252
  %v1266 = vadd.f32 %v1246, %v1252
  %v1267 = vadd.f32 %v1247, %v1252
  %v1268 = vadd.f32 %v1248, %v1252
  %v1269 = vmul.f32 %v1253, %v92
  %v1270 = vmul.f32 %v1254, %v93
  %v1271 = vmul.f32 %v1255, %v94
  %v1272 = vmul.f32 %v1256, %v95
  %v1273 = vmul.f32 %v1257, %v96
  %v1274 = vmul.f32 %v1258, %v97
  %v1275 = vmul.f32 %v1259, %v98
  %v1276 = vmul.f32 %v1260, %v99
  %v1277 = vmul.f32 %v1261, %v100
  %v1278 = vmul.f32 %v1262, %v101
  %v1279 = vmul.f32 %v1263, %v102
  %v1280 = vmul.f32 %v1264, %v103
  %v1281 = vmul.f32 %v1265, %v104
  %v1282 = vmul.f32 %v1266, %v105
  %v1283 = vmul.f32 %v1267, %v106
  %v1284 = vmul.f32 %v1268, %v107
  %v1285 = vpack.c.bf16 %v1270, %v1269
  %v1286 = vpack.c.bf16 %v1272, %v1271
  %v1287 = vpack.c.bf16 %v1274, %v1273
  %v1288 = vpack.c.bf16 %v1276, %v1275
  %v1289 = vpack.c.bf16 %v1278, %v1277
  %v1290 = vpack.c.bf16 %v1280, %v1279
  %v1291 = vpack.c.bf16 %v1282, %v1281
  %v1292 = vpack.c.bf16 %v1284, %v1283
  %v1293 = vld [vmem:[%s5] sm:$0xf]
  %v1294 = vld [vmem:[%s5 + $0x4] sm:$0xf]
  %v1297 = vunpack.c.l.b16 %v1293
  %v1298 = vunpack.c.l.b16 %v1294
  %v1299 = vpack.c.b16 %v1298, %v1297
  %1301 = vmatprep.subr.bf16.mxu0 0
  %1302 = vmatpush1.bf16.msra.mxu0 %v1285
  %1303 = vmatprep.subr.bf16.mxu0 0
  %1304 = vmatpush1.bf16.msra.mxu0 %v1286
  %1305 = vmatprep.subr.bf16.mxu0 0
  %1306 = vmatpush1.bf16.msra.mxu0 %v1287
  %1307 = vmatprep.subr.bf16.mxu0 0
  %1308 = vmatpush1.bf16.msra.mxu0 %v1288
  %1309 = vmatprep.subr.bf16.mxu0 0
  %1310 = vmatpush1.bf16.msra.mxu0 %v1289
  %1311 = vmatprep.subr.bf16.mxu0 0
  %1312 = vmatpush1.bf16.msra.mxu0 %v1290
  %1313 = vmatprep.subr.bf16.mxu0 0
  %1314 = vmatpush1.bf16.msra.mxu0 %v1291
  %1315 = vmatprep.subr.bf16.mxu0 0
  %1316 = vmatpush1.bf16.msra.mxu0 %v1292
  %1317 = vmatprep.subr.bf16.mxu0 0
  %1318 = vmatpush1.bf16.msra.mxu0 0
  %1319 = vmatprep.subr.bf16.mxu0 0
  %1320 = vmatpush1.bf16.msra.mxu0 0
  %1321 = vmatprep.subr.bf16.mxu0 0
  %1322 = vmatpush1.bf16.msra.mxu0 0
  %1323 = vmatprep.subr.bf16.mxu0 0
  %1324 = vmatpush1.bf16.msra.mxu0 0
  %1325 = vmatprep.subr.bf16.mxu0 0
  %1326 = vmatpush1.bf16.msra.mxu0 0
  %1327 = vmatprep.subr.bf16.mxu0 0
  %1328 = vmatpush1.bf16.msra.mxu0 0
  %1329 = vmatprep.subr.bf16.mxu0 0
  %1330 = vmatpush1.bf16.msra.mxu0 0
  %1331 = vmatprep.subr.bf16.mxu0 0
  %1332 = vmatpush1.bf16.msra.mxu0 0
  %1333 = vmatprep.mubr.bf16.mxu0 0
  %1334 = vmatmul.mubr.bf16.gmra.mrb[0].mxu0 %v1299
  %v1335 = vpop.f32.mrb[0].mxu0
  %v1336 = vadd.f32 0.0, %v1335
  %v1337 = vpop.f32.mrb[0].mxu0
  %v1338 = vpop.f32.mrb[0].mxu0
  %v1339 = vadd.f32 0.0, %v1338
  %v1340 = vpop.f32.mrb[0].mxu0
  %1341 = vdwg.mxu0
  %v1342 = vpack.c.bf16 %v1339, %v1336
  %v1343 = vld [vmem:[%s6] sm:$0xf]
  %v1344 = vld [vmem:[%s6 + $0x4] sm:$0xf]
  %v1345 = vld [vmem:[%s6 + $0x8] sm:$0xf]
  %v1346 = vld [vmem:[%s6 + $0xc] sm:$0xf]
  %v1347 = vld [vmem:[%s6 + $0x10] sm:$0xf]
  %v1348 = vld [vmem:[%s6 + $0x14] sm:$0xf]
  %v1349 = vld [vmem:[%s6 + $0x18] sm:$0xf]
  %v1350 = vld [vmem:[%s6 + $0x1c] sm:$0xf]
  %v1351 = vld [vmem:[%s6 + $0x20] sm:$0xf]
  %v1352 = vld [vmem:[%s6 + $0x24] sm:$0xf]
  %v1353 = vld [vmem:[%s6 + $0x28] sm:$0xf]
  %v1354 = vld [vmem:[%s6 + $0x2c] sm:$0xf]
  %v1355 = vld [vmem:[%s6 + $0x30] sm:$0xf]
  %v1356 = vld [vmem:[%s6 + $0x34] sm:$0xf]
  %v1357 = vld [vmem:[%s6 + $0x38] sm:$0xf]
  %v1358 = vld [vmem:[%s6 + $0x3c] sm:$0xf]
  %v1359 = vld [vmem:[%s7] sm:$0x1]
  %v1361 = vlaneseq
  %v1362 = vshrl.u32 %v1361, 7
  %v1363 = vsub.s32 0, %v1362
  %v1364 = vrot.slane %v1359, %v1363
  %v1382 = vunpack.c.l.b16 %v1343
  %v1383 = vunpack.c.l.b16 %v1344
  %v1384 = vunpack.c.l.b16 %v1345
  %v1385 = vunpack.c.l.b16 %v1346
  %v1386 = vunpack.c.l.b16 %v1347
  %v1387 = vunpack.c.l.b16 %v1348
  %v1388 = vunpack.c.l.b16 %v1349
  %v1389 = vunpack.c.l.b16 %v1350
  %v1390 = vunpack.c.l.b16 %v1351
  %v1391 = vunpack.c.l.b16 %v1352
  %v1392 = vunpack.c.l.b16 %v1353
  %v1393 = vunpack.c.l.b16 %v1354
  %v1394 = vunpack.c.l.b16 %v1355
  %v1395 = vunpack.c.l.b16 %v1356
  %v1396 = vunpack.c.l.b16 %v1357
  %v1397 = vunpack.c.l.b16 %v1358
  %v1398 = vpack.c.b16 %v1383, %v1382
  %v1399 = vpack.c.b16 %v1385, %v1384
  %v1400 = vpack.c.b16 %v1387, %v1386
  %v1401 = vpack.c.b16 %v1389, %v1388
  %v1402 = vpack.c.b16 %v1391, %v1390
  %v1403 = vpack.c.b16 %v1393, %v1392
  %v1404 = vpack.c.b16 %v1395, %v1394
  %v1405 = vpack.c.b16 %v1397, %v1396
  %1414 = vmatprep.subr.bf16.mxu0 0
  %1415 = vmatpush1.bf16.msra.mxu0 %v1398
  %1416 = vmatprep.subr.bf16.mxu0 0
  %1417 = vmatpush1.bf16.msra.mxu0 %v1399
  %1418 = vmatprep.subr.bf16.mxu0 0
  %1419 = vmatpush1.bf16.msra.mxu0 %v1400
  %1420 = vmatprep.subr.bf16.mxu0 0
  %1421 = vmatpush1.bf16.msra.mxu0 %v1401
  %1422 = vmatprep.subr.bf16.mxu0 0
  %1423 = vmatpush1.bf16.msra.mxu0 %v1402
  %1424 = vmatprep.subr.bf16.mxu0 0
  %1425 = vmatpush1.bf16.msra.mxu0 %v1403
  %1426 = vmatprep.subr.bf16.mxu0 0
  %1427 = vmatpush1.bf16.msra.mxu0 %v1404
  %1428 = vmatprep.subr.bf16.mxu0 0
  %1429 = vmatpush1.bf16.msra.mxu0 %v1405
  %1430 = vmatprep.subr.bf16.mxu0 0
  %1431 = vmatpush1.bf16.msra.mxu0 0
  %1432 = vmatprep.subr.bf16.mxu0 0
  %1433 = vmatpush1.bf16.msra.mxu0 0
  %1434 = vmatprep.subr.bf16.mxu0 0
  %1435 = vmatpush1.bf16.msra.mxu0 0
  %1436 = vmatprep.subr.bf16.mxu0 0
  %1437 = vmatpush1.bf16.msra.mxu0 0
  %1438 = vmatprep.subr.bf16.mxu0 0
  %1439 = vmatpush1.bf16.msra.mxu0 0
  %1440 = vmatprep.subr.bf16.mxu0 0
  %1441 = vmatpush1.bf16.msra.mxu0 0
  %1442 = vmatprep.subr.bf16.mxu0 0
  %1443 = vmatpush1.bf16.msra.mxu0 0
  %1444 = vmatprep.subr.bf16.mxu0 0
  %1445 = vmatpush1.bf16.msra.mxu0 0
  %1446 = vmatprep.mubr.bf16.mxu0 0
  %1447 = vmatmul.mubr.bf16.gmra.mrb[0].mxu0 %v1342
  %v1448 = vpop.f32.mrb[0].mxu0
  %v1449 = vadd.f32 %v1364, %v1448
  %v1450 = vpop.f32.mrb[0].mxu0
  %v1451 = vpop.f32.mrb[0].mxu0
  %v1452 = vadd.f32 %v1364, %v1451
  %v1453 = vpop.f32.mrb[0].mxu0
  %1454 = vdwg.mxu0
  %v1455 = vpack.c.bf16 %v1452, %v1449
  %v1456 = vld [vmem:[%s8] sm:$0xf]
  %v1457 = vld [vmem:[%s8 + $0x4] sm:$0xf]
  %v1458 = vld [vmem:[%s8 + $0x8] sm:$0xf]
  %v1459 = vld [vmem:[%s8 + $0xc] sm:$0xf]
  %v1460 = vld [vmem:[%s8 + $0x10] sm:$0xf]
  %v1461 = vld [vmem:[%s8 + $0x14] sm:$0xf]
  %v1462 = vld [vmem:[%s8 + $0x18] sm:$0xf]
  %v1463 = vld [vmem:[%s8 + $0x1c] sm:$0xf]
  %v1464 = vld [vmem:[%s8 + $0x20] sm:$0xf]
  %v1465 = vld [vmem:[%s8 + $0x24] sm:$0xf]
  %v1466 = vld [vmem:[%s8 + $0x28] sm:$0xf]
  %v1467 = vld [vmem:[%s8 + $0x2c] sm:$0xf]
  %v1468 = vld [vmem:[%s8 + $0x30] sm:$0xf]
  %v1469 = vld [vmem:[%s8 + $0x34] sm:$0xf]
  %v1470 = vld [vmem:[%s8 + $0x38] sm:$0xf]
  %v1471 = vld [vmem:[%s8 + $0x3c] sm:$0xf]
  %v1472 = vld [vmem:[%s9] sm:$0x1]
  %v1474 = vlaneseq
  %v1475 = vshrl.u32 %v1474, 7
  %v1476 = vsub.s32 0, %v1475
  %v1477 = vrot.slane %v1472, %v1476
  %v1495 = vunpack.c.l.b16 %v1456
  %v1496 = vunpack.c.l.b16 %v1457
  %v1497 = vunpack.c.l.b16 %v1458
  %v1498 = vunpack.c.l.b16 %v1459
  %v1499 = vunpack.c.l.b16 %v1460
  %v1500 = vunpack.c.l.b16 %v1461
  %v1501 = vunpack.c.l.b16 %v1462
  %v1502 = vunpack.c.l.b16 %v1463
  %v1503 = vunpack.c.l.b16 %v1464
  %v1504 = vunpack.c.l.b16 %v1465
  %v1505 = vunpack.c.l.b16 %v1466
  %v1506 = vunpack.c.l.b16 %v1467
  %v1507 = vunpack.c.l.b16 %v1468
  %v1508 = vunpack.c.l.b16 %v1469
  %v1509 = vunpack.c.l.b16 %v1470
  %v1510 = vunpack.c.l.b16 %v1471
  %v1511 = vpack.c.b16 %v1496, %v1495
  %v1512 = vpack.c.b16 %v1498, %v1497
  %v1513 = vpack.c.b16 %v1500, %v1499
  %v1514 = vpack.c.b16 %v1502, %v1501
  %v1515 = vpack.c.b16 %v1504, %v1503
  %v1516 = vpack.c.b16 %v1506, %v1505
  %v1517 = vpack.c.b16 %v1508, %v1507
  %v1518 = vpack.c.b16 %v1510, %v1509
  %1527 = vmatprep.subr.bf16.mxu0 0
  %1528 = vmatpush1.bf16.msra.mxu0 %v1511
  %1529 = vmatprep.subr.bf16.mxu0 0
  %1530 = vmatpush1.bf16.msra.mxu0 %v1512
  %1531 = vmatprep.subr.bf16.mxu0 0
  %1532 = vmatpush1.bf16.msra.mxu0 %v1513
  %1533 = vmatprep.subr.bf16.mxu0 0
  %1534 = vmatpush1.bf16.msra.mxu0 %v1514
  %1535 = vmatprep.subr.bf16.mxu0 0
  %1536 = vmatpush1.bf16.msra.mxu0 %v1515
  %1537 = vmatprep.subr.bf16.mxu0 0
  %1538 = vmatpush1.bf16.msra.mxu0 %v1516
  %1539 = vmatprep.subr.bf16.mxu0 0
  %1540 = vmatpush1.bf16.msra.mxu0 %v1517
  %1541 = vmatprep.subr.bf16.mxu0 0
  %1542 = vmatpush1.bf16.msra.mxu0 %v1518
  %1543 = vmatprep.subr.bf16.mxu0 0
  %1544 = vmatpush1.bf16.msra.mxu0 0
  %1545 = vmatprep.subr.bf16.mxu0 0
  %1546 = vmatpush1.bf16.msra.mxu0 0
  %1547 = vmatprep.subr.bf16.mxu0 0
  %1548 = vmatpush1.bf16.msra.mxu0 0
  %1549 = vmatprep.subr.bf16.mxu0 0
  %1550 = vmatpush1.bf16.msra.mxu0 0
  %1551 = vmatprep.subr.bf16.mxu0 0
  %1552 = vmatpush1.bf16.msra.mxu0 0
  %1553 = vmatprep.subr.bf16.mxu0 0
  %1554 = vmatpush1.bf16.msra.mxu0 0
  %1555 = vmatprep.subr.bf16.mxu0 0
  %1556 = vmatpush1.bf16.msra.mxu0 0
  %1557 = vmatprep.subr.bf16.mxu0 0
  %1558 = vmatpush1.bf16.msra.mxu0 0
  %1559 = vmatprep.mubr.bf16.mxu0 0
  %1560 = vmatmul.mubr.bf16.gmra.mrb[0].mxu0 %v1455
  %v1561 = vpop.f32.mrb[0].mxu0
  %v1562 = vadd.f32 %v1477, %v1561
  %v1563 = vpop.f32.mrb[0].mxu0
  %v1564 = vpop.f32.mrb[0].mxu0
  %v1565 = vadd.f32 %v1477, %v1564
  %v1566 = vpop.f32.mrb[0].mxu0
  %1567 = vdwg.mxu0
  %v1568 = vpack.c.bf16 %v1565, %v1562
  %v1569 = vld [vmem:[%s10] sm:$0xf]
  %v1570 = vld [vmem:[%s10 + $0x4] sm:$0xf]
  %v1571 = vld [vmem:[%s10 + $0x8] sm:$0xf]
  %v1572 = vld [vmem:[%s10 + $0xc] sm:$0xf]
  %v1573 = vld [vmem:[%s10 + $0x10] sm:$0xf]
  %v1574 = vld [vmem:[%s10 + $0x14] sm:$0xf]
  %v1575 = vld [vmem:[%s10 + $0x18] sm:$0xf]
  %v1576 = vld [vmem:[%s10 + $0x1c] sm:$0xf]
  %v1577 = vld [vmem:[%s10 + $0x20] sm:$0xf]
  %v1578 = vld [vmem:[%s10 + $0x24] sm:$0xf]
  %v1579 = vld [vmem:[%s10 + $0x28] sm:$0xf]
  %v1580 = vld [vmem:[%s10 + $0x2c] sm:$0xf]
  %v1581 = vld [vmem:[%s10 + $0x30] sm:$0xf]
  %v1582 = vld [vmem:[%s10 + $0x34] sm:$0xf]
  %v1583 = vld [vmem:[%s10 + $0x38] sm:$0xf]
  %v1584 = vld [vmem:[%s10 + $0x3c] sm:$0xf]
  %v1585 = vld [vmem:[%s11] sm:$0x1]
  %v1587 = vlaneseq
  %v1588 = vshrl.u32 %v1587, 7
  %v1589 = vsub.s32 0, %v1588
  %v1590 = vrot.slane %v1585, %v1589
  %v1608 = vunpack.c.l.b16 %v1569
  %v1609 = vunpack.c.l.b16 %v1570
  %v1610 = vunpack.c.l.b16 %v1571
  %v1611 = vunpack.c.l.b16 %v1572
  %v1612 = vunpack.c.l.b16 %v1573
  %v1613 = vunpack.c.l.b16 %v1574
  %v1614 = vunpack.c.l.b16 %v1575
  %v1615 = vunpack.c.l.b16 %v1576
  %v1616 = vunpack.c.l.b16 %v1577
  %v1617 = vunpack.c.l.b16 %v1578
  %v1618 = vunpack.c.l.b16 %v1579
  %v1619 = vunpack.c.l.b16 %v1580
  %v1620 = vunpack.c.l.b16 %v1581
  %v1621 = vunpack.c.l.b16 %v1582
  %v1622 = vunpack.c.l.b16 %v1583
  %v1623 = vunpack.c.l.b16 %v1584
  %v1624 = vpack.c.b16 %v1609, %v1608
  %v1625 = vpack.c.b16 %v1611, %v1610
  %v1626 = vpack.c.b16 %v1613, %v1612
  %v1627 = vpack.c.b16 %v1615, %v1614
  %v1628 = vpack.c.b16 %v1617, %v1616
  %v1629 = vpack.c.b16 %v1619, %v1618
  %v1630 = vpack.c.b16 %v1621, %v1620
  %v1631 = vpack.c.b16 %v1623, %v1622
  %1640 = vmatprep.subr.bf16.mxu0 0
  %1641 = vmatpush1.bf16.msra.mxu0 %v1624
  %1642 = vmatprep.subr.bf16.mxu0 0
  %1643 = vmatpush1.bf16.msra.mxu0 %v1625
  %1644 = vmatprep.subr.bf16.mxu0 0
  %1645 = vmatpush1.bf16.msra.mxu0 %v1626
  %1646 = vmatprep.subr.bf16.mxu0 0
  %1647 = vmatpush1.bf16.msra.mxu0 %v1627
  %1648 = vmatprep.subr.bf16.mxu0 0
  %1649 = vmatpush1.bf16.msra.mxu0 %v1628
  %1650 = vmatprep.subr.bf16.mxu0 0
  %1651 = vmatpush1.bf16.msra.mxu0 %v1629
  %1652 = vmatprep.subr.bf16.mxu0 0
  %1653 = vmatpush1.bf16.msra.mxu0 %v1630
  %1654 = vmatprep.subr.bf16.mxu0 0
  %1655 = vmatpush1.bf16.msra.mxu0 %v1631
  %1656 = vmatprep.subr.bf16.mxu0 0
  %1657 = vmatpush1.bf16.msra.mxu0 0
  %1658 = vmatprep.subr.bf16.mxu0 0
  %1659 = vmatpush1.bf16.msra.mxu0 0
  %1660 = vmatprep.subr.bf16.mxu0 0
  %1661 = vmatpush1.bf16.msra.mxu0 0
  %1662 = vmatprep.subr.bf16.mxu0 0
  %1663 = vmatpush1.bf16.msra.mxu0 0
  %1664 = vmatprep.subr.bf16.mxu0 0
  %1665 = vmatpush1.bf16.msra.mxu0 0
  %1666 = vmatprep.subr.bf16.mxu0 0
  %1667 = vmatpush1.bf16.msra.mxu0 0
  %1668 = vmatprep.subr.bf16.mxu0 0
  %1669 = vmatpush1.bf16.msra.mxu0 0
  %1670 = vmatprep.subr.bf16.mxu0 0
  %1671 = vmatpush1.bf16.msra.mxu0 0
  %1672 = vmatprep.mubr.bf16.mxu0 0
  %1673 = vmatmul.mubr.bf16.gmra.mrb[0].mxu0 %v1568
  %v1674 = vpop.f32.mrb[0].mxu0
  %v1675 = vadd.f32 %v1590, %v1674
  %v1676 = vpop.f32.mrb[0].mxu0
  %v1677 = vpop.f32.mrb[0].mxu0
  %v1678 = vadd.f32 %v1590, %v1677
  %v1679 = vpop.f32.mrb[0].mxu0
  %1680 = vdwg.mxu0
  %1681 = vst [vmem:[%s12] sm:$0xff] %v1675
  %1682 = vst [vmem:[%s12 + $0x8] sm:$0xff] %v1678
  // Predicated region
  $region46: #{gnn_forward.1} parent=0 // pred_check
    _
  $region47: #{gnn_forward.1} parent=0 // pred_check_branch
    %1684 = sbr.rel (0) target = $region49
  $region48: #{gnn_forward.1} parent=0 // pred_region
    _
  $region49: #{gnn_forward.1} parent=0 // pred_fallthru
    _
  // Predicated region
  $region50: #{gnn_forward.1} parent=0 // pred_check
    _
  $region51: #{gnn_forward.1} parent=0 // pred_check_branch
    %1686 = sbr.rel (0) target = $region53
  $region52: #{gnn_forward.1} parent=0 // pred_region
    _
  $region53: #{gnn_forward.1} parent=0 // pred_fallthru
    _

</llo_original>
